<compile_context>
chip_gen: v6e
topology: v6e:2x2x1
jax: 0.10.0
libtpu: 0.0.40
codegen_flags: <defaults>
</compile_context>

<pallas_src>
import functools
from dataclasses import dataclass
from typing import List, Optional

import jax
import jax.numpy as jnp
from jax.experimental import pallas as pl
from jax.experimental.pallas import tpu as pltpu


def _round_up(x: int, m: int) -> int:
    return ((x + m - 1) // m) * m


def _pick_block(n: int) -> int:
    # Instances per grid step. 64 keeps plenty of gather DMAs in flight
    # (hides per-descriptor latency), is a multiple of every sublane pack
    # (8 f32 / 16 bf16 / 32 int8), and stays far below VMEM limits even for
    # 28x28 masks (64 * 896 * 4B ~= 229 KiB per buffer).
    return min(64, _round_up(max(n, 1), 16))


def _pad_cols(x2d, hw_padded: int):
    hw = x2d.shape[1]
    if hw_padded != hw:
        x2d = jnp.pad(x2d, ((0, 0), (0, hw_padded - hw)))
    return x2d


# ----------------------------------------------------------------------------
# Manual class gather: TB row DMAs from HBM into one slot of a (2, TB, HWp)
# VMEM double buffer. All TB copies of a slot share one DMA semaphore.
# ----------------------------------------------------------------------------
def _start_row_gather(flat_idx_ref, logits_hbm, gather_buf, sems, block, slot, tb):
    base = block * tb
    for r in range(tb):
        idx = flat_idx_ref[base + r]
        pltpu.make_async_copy(
            logits_hbm.at[pl.ds(idx, 1), :],
            gather_buf.at[slot, pl.ds(r, 1), :],
            sems.at[slot],
        ).start()


def _wait_row_gather(logits_hbm, gather_buf, sems, slot, tb):
    # TODO(synk): DMA semaphores count bytes, so these tb waits could be collapsed
    # into a single (tb, HWp)-sized wait; kept per-row (identical shapes to the
    # started copies) to stay on the proven shared-semaphore pattern.
    for r in range(tb):
        pltpu.make_async_copy(
            logits_hbm.at[pl.ds(0, 1), :],
            gather_buf.at[slot, pl.ds(r, 1), :],
            sems.at[slot],
        ).wait()


def _masked_bce(x, y, j, tb, n_valid, hw_valid, mask_rows, mask_cols):
    # Numerically stable BCE-with-logits: max(x,0) - x*y + log1p(exp(-|x|)).
    per = jnp.maximum(x, 0.0) - x * y + jnp.log1p(jnp.exp(-jnp.abs(x)))
    if mask_rows:  # static: only emitted when padded instance rows exist
        row = j * tb + jax.lax.broadcasted_iota(jnp.int32, per.shape, 0)
        per = jnp.where(row < n_valid, per, 0.0)
    if mask_cols:  # static: only emitted when HW was padded up to 128 lanes
        col = jax.lax.broadcasted_iota(jnp.int32, per.shape, 1)
        per = jnp.where(col < hw_valid, per, 0.0)
    return per


# ----------------------------------------------------------------------------
# Inference kernels
# ----------------------------------------------------------------------------
def _sigmoid_gather_kernel(flat_idx_ref, logits_hbm, out_ref, gather_buf, sems, *, tb):
    j = pl.program_id(0)
    nb = pl.num_programs(0)
    slot = j % 2

    @pl.when(j == 0)  # prime slot 0
    def _():
        _start_row_gather(flat_idx_ref, logits_hbm, gather_buf, sems, 0, 0, tb)

    @pl.when(j + 1 < nb)  # prefetch next block before draining this one
    def _():
        _start_row_gather(flat_idx_ref, logits_hbm, gather_buf, sems,
                          j + 1, (j + 1) % 2, tb)

    _wait_row_gather(logits_hbm, gather_buf, sems, slot, tb)

    x = gather_buf[slot].astype(jnp.float32)          # (TB, HWp), lane-dense
    # exp and approximate reciprocal both run on the EUP slot -> VALU stays free.
    out_ref[...] = pl.reciprocal(1.0 + jnp.exp(-x), approx=True).astype(out_ref.dtype)


def _sigmoid_dense_kernel(x_ref, out_ref):
    x = x_ref[...].astype(jnp.float32)
    out_ref[...] = pl.reciprocal(1.0 + jnp.exp(-x), approx=True).astype(out_ref.dtype)


# ----------------------------------------------------------------------------
# Loss kernels
# ----------------------------------------------------------------------------
def _loss_gather_kernel(flat_idx_ref, logits_hbm, gt_ref, loss_ref,
                        gather_buf, acc_ref, sems, *,
                        tb, n_valid, hw_valid, n_total, mask_rows, mask_cols):
    j = pl.program_id(0)
    nb = pl.num_programs(0)
    slot = j % 2

    @pl.when(j == 0)
    def _():
        acc_ref[...] = jnp.zeros_like(acc_ref)
        _start_row_gather(flat_idx_ref, logits_hbm, gather_buf, sems, 0, 0, tb)

    @pl.when(j + 1 < nb)
    def _():
        _start_row_gather(flat_idx_ref, logits_hbm, gather_buf, sems,
                          j + 1, (j + 1) % 2, tb)

    _wait_row_gather(logits_hbm, gather_buf, sems, slot, tb)

    x = gather_buf[slot].astype(jnp.float32)          # (TB, HWp)
    y = gt_ref[...].astype(jnp.float32)               # (TB, HWp), cast on the VPU
    # Element-wise vector accumulation only; single cross-lane reduce at the end.
    acc_ref[...] += _masked_bce(x, y, j, tb, n_valid, hw_valid, mask_rows, mask_cols)

    # TODO(synk): for v7x 2-TC sharding, emit per-block partial sums on a "parallel"
    # axis (finishing the reduce in the wrapper); needs per-core gather priming.
    @pl.when(j == nb - 1)
    def _():
        loss_ref[...] = jnp.sum(acc_ref[...], keepdims=True) * (1.0 / n_total)


def _loss_dense_kernel(x_ref, gt_ref, loss_ref, acc_ref, *,
                       tb, n_valid, hw_valid, n_total, mask_rows, mask_cols):
    j = pl.program_id(0)

    @pl.when(j == 0)
    def _():
        acc_ref[...] = jnp.zeros_like(acc_ref)

    x = x_ref[...].astype(jnp.float32)
    y = gt_ref[...].astype(jnp.float32)
    acc_ref[...] += _masked_bce(x, y, j, tb, n_valid, hw_valid, mask_rows, mask_cols)

    @pl.when(j == pl.num_programs(0) - 1)
    def _():
        loss_ref[...] = jnp.sum(acc_ref[...], keepdims=True) * (1.0 / n_total)


# ----------------------------------------------------------------------------
# Wrappers
# ----------------------------------------------------------------------------
def mask_rcnn_inference_pallas(pred_mask_logits, class_pred=None, out_dtype=jnp.float32):
    # TODO(synk): out_dtype=jnp.bfloat16 halves output HBM traffic (biggest win on
    # v5e) if downstream mask pasting tolerates it.
    N, C, H, W = pred_mask_logits.shape
    if N == 0:
        return jnp.zeros((0, 1, H, W), out_dtype)
    HW = H * W
    HWp = _round_up(max(HW, 128), 128)
    TB = _pick_block(N)
    NB = _round_up(N, TB)
    nblk = NB // TB

    if C == 1:
        # Class-agnostic fast path: no gather; contiguous tiles streamed with the
        # built-in double-buffered auto-pipeline at full HBM bandwidth.
        x = _pad_cols(pred_mask_logits.reshape(N, HW), HWp)
        if NB != N:
            x = jnp.pad(x, ((0, NB - N), (0, 0)))
        probs = pl.pallas_call(
            _sigmoid_dense_kernel,
            out_shape=jax.ShapeDtypeStruct((NB, HWp), out_dtype),
            grid_spec=pltpu.PrefetchScalarGridSpec(
                num_scalar_prefetch=0,
                grid=(nblk,),
                in_specs=[pl.BlockSpec((TB, HWp), lambda j: (j, 0))],
                out_specs=pl.BlockSpec((TB, HWp), lambda j: (j, 0)),
            ),
            compiler_params=pltpu.CompilerParams(dimension_semantics=("parallel",)),
        )(x)
        return probs[:N, :HW].reshape(N, 1, H, W)

    class_pred = class_pred.astype(jnp.int32)
    flat_idx = jnp.arange(N, dtype=jnp.int32) * C + class_pred      # row in (N*C, HWp)
    # Edge-pad: tail rows re-gather the last valid row (discarded by the final slice);
    # TB extra entries keep the (never-executed) last-block prefetch reads in bounds.
    flat_idx = jnp.pad(flat_idx, (0, NB - N + TB), mode="edge")
    logits_flat = _pad_cols(pred_mask_logits.reshape(N * C, HW), HWp)

    grid_spec = pltpu.PrefetchScalarGridSpec(
        num_scalar_prefetch=1,
        grid=(nblk,),
        in_specs=[pl.BlockSpec(memory_space=pl.ANY)],               # raw HBM logits
        out_specs=pl.BlockSpec((TB, HWp), lambda j, idx: (j, 0)),
        scratch_shapes=[
            pltpu.VMEM((2, TB, HWp), pred_mask_logits.dtype),       # double-buffered gather
            pltpu.SemaphoreType.DMA((2,)),                          # one shared sem per slot
        ],
    )
    probs = pl.pallas_call(
        functools.partial(_sigmoid_gather_kernel, tb=TB),
        out_shape=jax.ShapeDtypeStruct((NB, HWp), out_dtype),
        grid_spec=grid_spec,
        # "arbitrary": the cross-step gather double buffer is primed at j == 0, so
        # this axis must run sequentially on one core.
        compiler_params=pltpu.CompilerParams(dimension_semantics=("arbitrary",)),
    )(flat_idx, logits_flat)
    return probs[:N, :HW].reshape(N, 1, H, W)


def mask_rcnn_loss_pallas(pred_mask_logits, gt_classes, gt_masks):
    N, C, H, W = pred_mask_logits.shape
    if N == 0:
        return jnp.sum(pred_mask_logits) * 0.0
    HW = H * W
    HWp = _round_up(max(HW, 128), 128)
    TB = _pick_block(N)
    NB = _round_up(N, TB)
    nblk = NB // TB
    n_total = float(N * HW)
    mask_rows = NB != N
    mask_cols = HWp != HW

    if not jnp.issubdtype(gt_masks.dtype, jnp.floating):
        gt_masks = gt_masks.astype(jnp.float32)      # bool/uint8 -> fp (tile-min safety)
    gt_flat = _pad_cols(gt_masks.reshape(N, HW), HWp)
    if NB != N:
        gt_flat = jnp.pad(gt_flat, ((0, NB - N), (0, 0)))

    if C == 1:
        # Class-agnostic fast path: no gather needed.
        x = _pad_cols(pred_mask_logits.reshape(N, HW), HWp)
        if NB != N:
            x = jnp.pad(x, ((0, NB - N), (0, 0)))
        loss = pl.pallas_call(
            functools.partial(_loss_dense_kernel, tb=TB, n_valid=N, hw_valid=HW,
                              n_total=n_total, mask_rows=mask_rows, mask_cols=mask_cols),
            out_shape=jax.ShapeDtypeStruct((1, 1), jnp.float32),
            grid_spec=pltpu.PrefetchScalarGridSpec(
                num_scalar_prefetch=0,
                grid=(nblk,),
                in_specs=[pl.BlockSpec((TB, HWp), lambda j: (j, 0)),
                          pl.BlockSpec((TB, HWp), lambda j: (j, 0))],
                out_specs=pl.BlockSpec((1, 1), lambda j: (0, 0)),
                scratch_shapes=[pltpu.VMEM((TB, HWp), jnp.float32)],
            ),
            compiler_params=pltpu.CompilerParams(dimension_semantics=("arbitrary",)),
        )(x, gt_flat)
        return loss[0, 0]

    gt_classes = gt_classes.astype(jnp.int32)
    flat_idx = jnp.arange(N, dtype=jnp.int32) * C + gt_classes
    flat_idx = jnp.pad(flat_idx, (0, NB - N + TB), mode="edge")
    logits_flat = _pad_cols(pred_mask_logits.reshape(N * C, HW), HWp)

    grid_spec = pltpu.PrefetchScalarGridSpec(
        num_scalar_prefetch=1,
        grid=(nblk,),
        in_specs=[
            pl.BlockSpec(memory_space=pl.ANY),                      # logits in HBM
            pl.BlockSpec((TB, HWp), lambda j, idx: (j, 0)),         # gt masks, auto-pipelined
        ],
        out_specs=pl.BlockSpec((1, 1), lambda j, idx: (0, 0)),
        scratch_shapes=[
            pltpu.VMEM((2, TB, HWp), pred_mask_logits.dtype),       # double-buffered gather
            pltpu.VMEM((TB, HWp), jnp.float32),                     # vector partial-sum acc
            pltpu.SemaphoreType.DMA((2,)),
        ],
    )
    loss = pl.pallas_call(
        functools.partial(_loss_gather_kernel, tb=TB, n_valid=N, hw_valid=HW,
                          n_total=n_total, mask_rows=mask_rows, mask_cols=mask_cols),
        out_shape=jax.ShapeDtypeStruct((1, 1), jnp.float32),
        grid_spec=grid_spec,
        compiler_params=pltpu.CompilerParams(dimension_semantics=("arbitrary",)),
    )(flat_idx, logits_flat, gt_flat)
    return loss[0, 0]


# ----------------------------------------------------------------------------
# Lightweight Instances stand-in + head module
# ----------------------------------------------------------------------------
@dataclass
class Instances:
    pred_classes: Optional[jnp.ndarray] = None
    gt_classes: Optional[jnp.ndarray] = None
    gt_masks: Optional[jnp.ndarray] = None    # already cropped/resized to (n, H, W)
    pred_masks: Optional[jnp.ndarray] = None

    def __len__(self):
        for a in (self.pred_classes, self.gt_classes, self.gt_masks):
            if a is not None:
                return int(a.shape[0])
        return 0


class BaseMaskRCNNHeadPallas:
    def __init__(self, vis_period: int = 0, training: bool = True):
        self.vis_period = vis_period
        self.training = training

    def layers(self, x):
        # TODO(synk): `layers` is abstract in BaseMaskRCNNHead; identity pass-through.
        return x

    def forward(self, x, instances: List[Instances]):
        x = self.layers(x)
        if self.training:
            valid = [i for i in instances if len(i) > 0]
            # TODO(synk): gt_masks.crop_and_resize (ROIAlign rasterization) is done
            # upstream; gt masks here are assumed pre-rasterized to mask_side_len.
            if len(valid) == 0:
                return {"loss_mask": jnp.sum(x) * 0.0}
            gt_masks = jnp.concatenate([i.gt_masks for i in valid], axis=0)
            if x.shape[1] == 1:
                gt_classes = None
            else:
                gt_classes = jnp.concatenate([i.gt_classes for i in valid], axis=0)
            # TODO(synk): event-storage accuracy / false-positive / false-negative
            # scalars and vis_period image dumps are logging-only side effects, not
            # computed here.
            return {"loss_mask": mask_rcnn_loss_pallas(x, gt_classes, gt_masks)}
        else:
            if x.shape[1] == 1:
                class_pred = None
            else:
                class_pred = jnp.concatenate([i.pred_classes for i in instances], axis=0)
            probs = mask_rcnn_inference_pallas(x, class_pred)
            offset = 0
            for inst in instances:
                n = len(inst)
                inst.pred_masks = probs[offset:offset + n]
                offset += n
            return instances


# ----------------------------------------------------------------------------
# Pure-JAX references for validation
# ----------------------------------------------------------------------------
def _loss_ref(logits, gt_classes, gt_masks):
    N, C = logits.shape[:2]
    if C == 1:
        x = logits[:, 0].astype(jnp.float32)
    else:
        x = logits[jnp.arange(N), gt_classes].astype(jnp.float32)
    y = gt_masks.astype(jnp.float32)
    per = jnp.maximum(x, 0.0) - x * y + jnp.log1p(jnp.exp(-jnp.abs(x)))
    return jnp.mean(per)


def _inference_ref(logits, class_pred):
    N, C = logits.shape[:2]
    if C == 1:
        return jax.nn.sigmoid(logits)
    sel = logits[jnp.arange(N), class_pred]
    return jax.nn.sigmoid(sel)[:, None]


if __name__ == "__main__":
    key = jax.random.PRNGKey(0)
    ks = jax.random.split(key, 8)

    # --- Test 1: class-specific head through the module wrapper (N=4, C=4, 16x16) ---
    N, C, H, W = 4, 4, 16, 16
    logits = jax.random.normal(ks[0], (N, C, H, W), dtype=jnp.float32)
    gt_classes = jax.random.randint(ks[1], (N,), 0, C, dtype=jnp.int32)
    gt_masks = (jax.random.uniform(ks[2], (N, H, W)) > 0.5).astype(jnp.float32)
    pred_classes = jax.random.randint(ks[3], (N,), 0, C, dtype=jnp.int32)

    train_instances = [
        Instances(gt_classes=gt_classes[:2], gt_masks=gt_masks[:2]),
        Instances(gt_classes=gt_classes[2:], gt_masks=gt_masks[2:]),
    ]
    infer_instances = [
        Instances(pred_classes=pred_classes[:2]),
        Instances(pred_classes=pred_classes[2:]),
    ]

    head_train = BaseMaskRCNNHeadPallas(vis_period=0, training=True)
    loss = jax.block_until_ready(head_train.forward(logits, train_instances)["loss_mask"])
    loss_ref = _loss_ref(logits, gt_classes, gt_masks)
    assert jnp.allclose(loss, loss_ref, atol=1e-4, rtol=1e-4), (loss, loss_ref)

    head_eval = BaseMaskRCNNHeadPallas(vis_period=0, training=False)
    out_instances = head_eval.forward(logits, infer_instances)
    probs = jax.block_until_ready(jnp.concatenate([i.pred_masks for i in out_instances], 0))
    probs_ref = _inference_ref(logits, pred_classes)
    assert probs.shape == (N, 1, H, W)
    assert jnp.allclose(probs, probs_ref, atol=3e-3, rtol=3e-3)

    # --- Test 2: non-lane-aligned mask size (14x14 -> HW=196 padded to 256), N=5 ---
    N2, C2, H2 = 5, 3, 14
    logits2 = jax.random.normal(ks[4], (N2, C2, H2, H2), dtype=jnp.float32)
    classes2 = jax.random.randint(ks[5], (N2,), 0, C2, dtype=jnp.int32)
    gt_masks2 = (jax.random.uniform(ks[6], (N2, H2, H2)) > 0.5).astype(jnp.float32)
    loss2 = jax.block_until_ready(mask_rcnn_loss_pallas(logits2, classes2, gt_masks2))
    assert jnp.allclose(loss2, _loss_ref(logits2, classes2, gt_masks2),
                        atol=1e-4, rtol=1e-4), loss2
    probs2 = jax.block_until_ready(mask_rcnn_inference_pallas(logits2, classes2))
    assert jnp.allclose(probs2, _inference_ref(logits2, classes2), atol=3e-3, rtol=3e-3)

    # --- Test 3: class-agnostic head (C == 1) fast path ---
    logits3 = jax.random.normal(ks[7], (N, 1, H, W), dtype=jnp.float32)
    loss3 = jax.block_until_ready(mask_rcnn_loss_pallas(logits3, None, gt_masks))
    assert jnp.allclose(loss3, _loss_ref(logits3, None, gt_masks), atol=1e-4, rtol=1e-4)
    probs3 = jax.block_until_ready(mask_rcnn_inference_pallas(logits3, None))
    assert probs3.shape == (N, 1, H, W)
    assert jnp.allclose(probs3, _inference_ref(logits3, None), atol=3e-3, rtol=3e-3)

    print("KERNEL_OK")
</pallas_src>

<mosaic_0001>
module attributes {stable_mosaic.version = 11 : i64} {
  func.func @_loss_gather_kernel(%arg0: i32, %arg1: memref<32xi32, #tpu.memory_space<smem>>, %arg2: memref<16x256xf32, #tpu.memory_space<any>>, %arg3: memref<16x256xf32, #tpu.memory_space<vmem>>, %arg4: memref<1x1xf32, #tpu.memory_space<vmem>>, %arg5: memref<2x16x256xf32, #tpu.memory_space<vmem>>, %arg6: memref<16x256xf32, #tpu.memory_space<vmem>>, %arg7: memref<2x!tpu.dma_semaphore, #tpu.memory_space<semaphore_mem>>) attributes {dimension_semantics = [#tpu.dimension_semantics<arbitrary>], iteration_bounds = array<i64: 1>, scalar_prefetch = 1 : i64, scratch_operands = 3 : i64, tpu.core_type = #tpu.core_type<tc>, window_params = [{}, {transform_indices = @transform_1, window_bounds = array<i64: 16, 256>}, {pipeline_mode = #tpu.pipeline_mode<synchronous>, transform_indices = @transform_2, window_bounds = array<i64: 1, 1>}]} {
    %c2_i32 = arith.constant 2 : i32
    %c0_i32 = arith.constant 0 : i32
    %0 = arith.cmpi eq, %c2_i32, %c0_i32 : i32
    %c1_i32 = arith.constant 1 : i32
    %1 = arith.select %0, %c1_i32, %c2_i32 : i32
    %2 = arith.remsi %arg0, %1 : i32
    %c0_i32_0 = arith.constant 0 : i32
    %3 = arith.cmpi ne, %2, %c0_i32_0 : i32
    %c0_i32_1 = arith.constant 0 : i32
    %4 = arith.cmpi slt, %2, %c0_i32_1 : i32
    %c0_i32_2 = arith.constant 0 : i32
    %5 = arith.cmpi slt, %1, %c0_i32_2 : i32
    %6 = arith.xori %4, %5 : i1
    %7 = arith.andi %6, %3 : i1
    %8 = arith.addi %2, %1 : i32
    %9 = arith.select %7, %8, %2 : i32
    %c0_i32_3 = arith.constant 0 : i32
    %10 = arith.cmpi eq, %arg0, %c0_i32_3 : i32
    %11 = arith.extui %10 : i1 to i32
    %c0_i32_4 = arith.constant 0 : i32
    %12 = arith.cmpi ne, %11, %c0_i32_4 : i32
    scf.if %12 {
      %cst_71 = arith.constant 0.000000e+00 : f32
      %125 = vector.broadcast %cst_71 : f32 to vector<16x256xf32>
      %c0_72 = arith.constant 0 : index
      %c0_73 = arith.constant 0 : index
      %126 = vector.load %arg6[%c0_72, %c0_73] : memref<16x256xf32, #tpu.memory_space<vmem>>, vector<16x256xf32>
      tpu.vector_store %arg6[%c0_72, %c0_73], %125 {strides = array<i32>} : memref<16x256xf32, #tpu.memory_space<vmem>>, vector<16x256xf32>,
      %c0_74 = arith.constant 0 : index
      %127 = memref.load %arg1[%c0_74] : memref<32xi32, #tpu.memory_space<smem>>
      %c0_i32_75 = arith.constant 0 : i32
      %c0_i32_76 = arith.constant 0 : i32
      %c0_i32_77 = arith.constant 0 : i32
      %128 = tpu.memref_slice %arg2[%127, %c0_i32_77] : memref<16x256xf32, #tpu.memory_space<any>> -> memref<1x256xf32, #tpu.memory_space<any>>
      %c0_i32_78 = arith.constant 0 : i32
      %c0_i32_79 = arith.constant 0 : i32
      %129 = tpu.memref_slice %arg5[%c0_i32_75, %c0_i32_78, %c0_i32_79] : memref<2x16x256xf32, #tpu.memory_space<vmem>> -> memref<1x1x256xf32, #tpu.memory_space<vmem>>
      %130 = tpu.memref_squeeze %129 : memref<1x1x256xf32, #tpu.memory_space<vmem>> -> memref<1x256xf32, #tpu.memory_space<vmem>>
      %131 = tpu.memref_slice %arg7[%c0_i32_76] : memref<2x!tpu.dma_semaphore, #tpu.memory_space<semaphore_mem>> -> memref<1x!tpu.dma_semaphore, #tpu.memory_space<semaphore_mem>>
      %132 = tpu.memref_squeeze %131 : memref<1x!tpu.dma_semaphore, #tpu.memory_space<semaphore_mem>> -> memref<!tpu.dma_semaphore, #tpu.memory_space<semaphore_mem>>
      tpu.enqueue_dma source(%128 : memref<1x256xf32, #tpu.memory_space<any>>) target(%130 : memref<1x256xf32, #tpu.memory_space<vmem>>) target_semaphore(%132 : memref<!tpu.dma_semaphore, #tpu.memory_space<semaphore_mem>>)
      %c1 = arith.constant 1 : index
      %133 = memref.load %arg1[%c1] : memref<32xi32, #tpu.memory_space<smem>>
      %c0_i32_80 = arith.constant 0 : i32
      %c0_i32_81 = arith.constant 0 : i32
      %c0_i32_82 = arith.constant 0 : i32
      %134 = tpu.memref_slice %arg2[%133, %c0_i32_82] : memref<16x256xf32, #tpu.memory_space<any>> -> memref<1x256xf32, #tpu.memory_space<any>>
      %c1_i32_83 = arith.constant 1 : i32
      %c0_i32_84 = arith.constant 0 : i32
      %135 = tpu.memref_slice %arg5[%c0_i32_80, %c1_i32_83, %c0_i32_84] : memref<2x16x256xf32, #tpu.memory_space<vmem>> -> memref<1x1x256xf32, #tpu.memory_space<vmem>>
      %136 = tpu.memref_squeeze %135 : memref<1x1x256xf32, #tpu.memory_space<vmem>> -> memref<1x256xf32, #tpu.memory_space<vmem>>
      %137 = tpu.memref_slice %arg7[%c0_i32_81] : memref<2x!tpu.dma_semaphore, #tpu.memory_space<semaphore_mem>> -> memref<1x!tpu.dma_semaphore, #tpu.memory_space<semaphore_mem>>
      %138 = tpu.memref_squeeze %137 : memref<1x!tpu.dma_semaphore, #tpu.memory_space<semaphore_mem>> -> memref<!tpu.dma_semaphore, #tpu.memory_space<semaphore_mem>>
      tpu.enqueue_dma source(%134 : memref<1x256xf32, #tpu.memory_space<any>>) target(%136 : memref<1x256xf32, #tpu.memory_space<vmem>>) target_semaphore(%138 : memref<!tpu.dma_semaphore, #tpu.memory_space<semaphore_mem>>)
      %c2 = arith.constant 2 : index
      %139 = memref.load %arg1[%c2] : memref<32xi32, #tpu.memory_space<smem>>
      %c0_i32_85 = arith.constant 0 : i32
      %c0_i32_86 = arith.constant 0 : i32
      %c0_i32_87 = arith.constant 0 : i32
      %140 = tpu.memref_slice %arg2[%139, %c0_i32_87] : memref<16x256xf32, #tpu.memory_space<any>> -> memref<1x256xf32, #tpu.memory_space<any>>
      %c2_i32_88 = arith.constant 2 : i32
      %c0_i32_89 = arith.constant 0 : i32
      %141 = tpu.memref_slice %arg5[%c0_i32_85, %c2_i32_88, %c0_i32_89] : memref<2x16x256xf32, #tpu.memory_space<vmem>> -> memref<1x1x256xf32, #tpu.memory_space<vmem>>
      %142 = tpu.memref_squeeze %141 : memref<1x1x256xf32, #tpu.memory_space<vmem>> -> memref<1x256xf32, #tpu.memory_space<vmem>>
      %143 = tpu.memref_slice %arg7[%c0_i32_86] : memref<2x!tpu.dma_semaphore, #tpu.memory_space<semaphore_mem>> -> memref<1x!tpu.dma_semaphore, #tpu.memory_space<semaphore_mem>>
      %144 = tpu.memref_squeeze %143 : memref<1x!tpu.dma_semaphore, #tpu.memory_space<semaphore_mem>> -> memref<!tpu.dma_semaphore, #tpu.memory_space<semaphore_mem>>
      tpu.enqueue_dma source(%140 : memref<1x256xf32, #tpu.memory_space<any>>) target(%142 : memref<1x256xf32, #tpu.memory_space<vmem>>) target_semaphore(%144 : memref<!tpu.dma_semaphore, #tpu.memory_space<semaphore_mem>>)
      %c3 = arith.constant 3 : index
      %145 = memref.load %arg1[%c3] : memref<32xi32, #tpu.memory_space<smem>>
      %c0_i32_90 = arith.constant 0 : i32
      %c0_i32_91 = arith.constant 0 : i32
      %c0_i32_92 = arith.constant 0 : i32
      %146 = tpu.memref_slice %arg2[%145, %c0_i32_92] : memref<16x256xf32, #tpu.memory_space<any>> -> memref<1x256xf32, #tpu.memory_space<any>>
      %c3_i32_93 = arith.constant 3 : i32
      %c0_i32_94 = arith.constant 0 : i32
      %147 = tpu.memref_slice %arg5[%c0_i32_90, %c3_i32_93, %c0_i32_94] : memref<2x16x256xf32, #tpu.memory_space<vmem>> -> memref<1x1x256xf32, #tpu.memory_space<vmem>>
      %148 = tpu.memref_squeeze %147 : memref<1x1x256xf32, #tpu.memory_space<vmem>> -> memref<1x256xf32, #tpu.memory_space<vmem>>
      %149 = tpu.memref_slice %arg7[%c0_i32_91] : memref<2x!tpu.dma_semaphore, #tpu.memory_space<semaphore_mem>> -> memref<1x!tpu.dma_semaphore, #tpu.memory_space<semaphore_mem>>
      %150 = tpu.memref_squeeze %149 : memref<1x!tpu.dma_semaphore, #tpu.memory_space<semaphore_mem>> -> memref<!tpu.dma_semaphore, #tpu.memory_space<semaphore_mem>>
      tpu.enqueue_dma source(%146 : memref<1x256xf32, #tpu.memory_space<any>>) target(%148 : memref<1x256xf32, #tpu.memory_space<vmem>>) target_semaphore(%150 : memref<!tpu.dma_semaphore, #tpu.memory_space<semaphore_mem>>)
      %c4 = arith.constant 4 : index
      %151 = memref.load %arg1[%c4] : memref<32xi32, #tpu.memory_space<smem>>
      %c0_i32_95 = arith.constant 0 : i32
      %c0_i32_96 = arith.constant 0 : i32
      %c0_i32_97 = arith.constant 0 : i32
      %152 = tpu.memref_slice %arg2[%151, %c0_i32_97] : memref<16x256xf32, #tpu.memory_space<any>> -> memref<1x256xf32, #tpu.memory_space<any>>
      %c4_i32_98 = arith.constant 4 : i32
      %c0_i32_99 = arith.constant 0 : i32
      %153 = tpu.memref_slice %arg5[%c0_i32_95, %c4_i32_98, %c0_i32_99] : memref<2x16x256xf32, #tpu.memory_space<vmem>> -> memref<1x1x256xf32, #tpu.memory_space<vmem>>
      %154 = tpu.memref_squeeze %153 : memref<1x1x256xf32, #tpu.memory_space<vmem>> -> memref<1x256xf32, #tpu.memory_space<vmem>>
      %155 = tpu.memref_slice %arg7[%c0_i32_96] : memref<2x!tpu.dma_semaphore, #tpu.memory_space<semaphore_mem>> -> memref<1x!tpu.dma_semaphore, #tpu.memory_space<semaphore_mem>>
      %156 = tpu.memref_squeeze %155 : memref<1x!tpu.dma_semaphore, #tpu.memory_space<semaphore_mem>> -> memref<!tpu.dma_semaphore, #tpu.memory_space<semaphore_mem>>
      tpu.enqueue_dma source(%152 : memref<1x256xf32, #tpu.memory_space<any>>) target(%154 : memref<1x256xf32, #tpu.memory_space<vmem>>) target_semaphore(%156 : memref<!tpu.dma_semaphore, #tpu.memory_space<semaphore_mem>>)
      %c5 = arith.constant 5 : index
      %157 = memref.load %arg1[%c5] : memref<32xi32, #tpu.memory_space<smem>>
      %c0_i32_100 = arith.constant 0 : i32
      %c0_i32_101 = arith.constant 0 : i32
      %c0_i32_102 = arith.constant 0 : i32
      %158 = tpu.memref_slice %arg2[%157, %c0_i32_102] : memref<16x256xf32, #tpu.memory_space<any>> -> memref<1x256xf32, #tpu.memory_space<any>>
      %c5_i32_103 = arith.constant 5 : i32
      %c0_i32_104 = arith.constant 0 : i32
      %159 = tpu.memref_slice %arg5[%c0_i32_100, %c5_i32_103, %c0_i32_104] : memref<2x16x256xf32, #tpu.memory_space<vmem>> -> memref<1x1x256xf32, #tpu.memory_space<vmem>>
      %160 = tpu.memref_squeeze %159 : memref<1x1x256xf32, #tpu.memory_space<vmem>> -> memref<1x256xf32, #tpu.memory_space<vmem>>
      %161 = tpu.memref_slice %arg7[%c0_i32_101] : memref<2x!tpu.dma_semaphore, #tpu.memory_space<semaphore_mem>> -> memref<1x!tpu.dma_semaphore, #tpu.memory_space<semaphore_mem>>
      %162 = tpu.memref_squeeze %161 : memref<1x!tpu.dma_semaphore, #tpu.memory_space<semaphore_mem>> -> memref<!tpu.dma_semaphore, #tpu.memory_space<semaphore_mem>>
      tpu.enqueue_dma source(%158 : memref<1x256xf32, #tpu.memory_space<any>>) target(%160 : memref<1x256xf32, #tpu.memory_space<vmem>>) target_semaphore(%162 : memref<!tpu.dma_semaphore, #tpu.memory_space<semaphore_mem>>)
      %c6 = arith.constant 6 : index
      %163 = memref.load %arg1[%c6] : memref<32xi32, #tpu.memory_space<smem>>
      %c0_i32_105 = arith.constant 0 : i32
      %c0_i32_106 = arith.constant 0 : i32
      %c0_i32_107 = arith.constant 0 : i32
      %164 = tpu.memref_slice %arg2[%163, %c0_i32_107] : memref<16x256xf32, #tpu.memory_space<any>> -> memref<1x256xf32, #tpu.memory_space<any>>
      %c6_i32_108 = arith.constant 6 : i32
      %c0_i32_109 = arith.constant 0 : i32
      %165 = tpu.memref_slice %arg5[%c0_i32_105, %c6_i32_108, %c0_i32_109] : memref<2x16x256xf32, #tpu.memory_space<vmem>> -> memref<1x1x256xf32, #tpu.memory_space<vmem>>
      %166 = tpu.memref_squeeze %165 : memref<1x1x256xf32, #tpu.memory_space<vmem>> -> memref<1x256xf32, #tpu.memory_space<vmem>>
      %167 = tpu.memref_slice %arg7[%c0_i32_106] : memref<2x!tpu.dma_semaphore, #tpu.memory_space<semaphore_mem>> -> memref<1x!tpu.dma_semaphore, #tpu.memory_space<semaphore_mem>>
      %168 = tpu.memref_squeeze %167 : memref<1x!tpu.dma_semaphore, #tpu.memory_space<semaphore_mem>> -> memref<!tpu.dma_semaphore, #tpu.memory_space<semaphore_mem>>
      tpu.enqueue_dma source(%164 : memref<1x256xf32, #tpu.memory_space<any>>) target(%166 : memref<1x256xf32, #tpu.memory_space<vmem>>) target_semaphore(%168 : memref<!tpu.dma_semaphore, #tpu.memory_space<semaphore_mem>>)
      %c7 = arith.constant 7 : index
      %169 = memref.load %arg1[%c7] : memref<32xi32, #tpu.memory_space<smem>>
      %c0_i32_110 = arith.constant 0 : i32
      %c0_i32_111 = arith.constant 0 : i32
      %c0_i32_112 = arith.constant 0 : i32
      %170 = tpu.memref_slice %arg2[%169, %c0_i32_112] : memref<16x256xf32, #tpu.memory_space<any>> -> memref<1x256xf32, #tpu.memory_space<any>>
      %c7_i32_113 = arith.constant 7 : i32
      %c0_i32_114 = arith.constant 0 : i32
      %171 = tpu.memref_slice %arg5[%c0_i32_110, %c7_i32_113, %c0_i32_114] : memref<2x16x256xf32, #tpu.memory_space<vmem>> -> memref<1x1x256xf32, #tpu.memory_space<vmem>>
      %172 = tpu.memref_squeeze %171 : memref<1x1x256xf32, #tpu.memory_space<vmem>> -> memref<1x256xf32, #tpu.memory_space<vmem>>
      %173 = tpu.memref_slice %arg7[%c0_i32_111] : memref<2x!tpu.dma_semaphore, #tpu.memory_space<semaphore_mem>> -> memref<1x!tpu.dma_semaphore, #tpu.memory_space<semaphore_mem>>
      %174 = tpu.memref_squeeze %173 : memref<1x!tpu.dma_semaphore, #tpu.memory_space<semaphore_mem>> -> memref<!tpu.dma_semaphore, #tpu.memory_space<semaphore_mem>>
      tpu.enqueue_dma source(%170 : memref<1x256xf32, #tpu.memory_space<any>>) target(%172 : memref<1x256xf32, #tpu.memory_space<vmem>>) target_semaphore(%174 : memref<!tpu.dma_semaphore, #tpu.memory_space<semaphore_mem>>)
      %c8 = arith.constant 8 : index
      %175 = memref.load %arg1[%c8] : memref<32xi32, #tpu.memory_space<smem>>
      %c0_i32_115 = arith.constant 0 : i32
      %c0_i32_116 = arith.constant 0 : i32
      %c0_i32_117 = arith.constant 0 : i32
      %176 = tpu.memref_slice %arg2[%175, %c0_i32_117] : memref<16x256xf32, #tpu.memory_space<any>> -> memref<1x256xf32, #tpu.memory_space<any>>
      %c8_i32_118 = arith.constant 8 : i32
      %c0_i32_119 = arith.constant 0 : i32
      %177 = tpu.memref_slice %arg5[%c0_i32_115, %c8_i32_118, %c0_i32_119] : memref<2x16x256xf32, #tpu.memory_space<vmem>> -> memref<1x1x256xf32, #tpu.memory_space<vmem>>
      %178 = tpu.memref_squeeze %177 : memref<1x1x256xf32, #tpu.memory_space<vmem>> -> memref<1x256xf32, #tpu.memory_space<vmem>>
      %179 = tpu.memref_slice %arg7[%c0_i32_116] : memref<2x!tpu.dma_semaphore, #tpu.memory_space<semaphore_mem>> -> memref<1x!tpu.dma_semaphore, #tpu.memory_space<semaphore_mem>>
      %180 = tpu.memref_squeeze %179 : memref<1x!tpu.dma_semaphore, #tpu.memory_space<semaphore_mem>> -> memref<!tpu.dma_semaphore, #tpu.memory_space<semaphore_mem>>
      tpu.enqueue_dma source(%176 : memref<1x256xf32, #tpu.memory_space<any>>) target(%178 : memref<1x256xf32, #tpu.memory_space<vmem>>) target_semaphore(%180 : memref<!tpu.dma_semaphore, #tpu.memory_space<semaphore_mem>>)
      %c9 = arith.constant 9 : index
      %181 = memref.load %arg1[%c9] : memref<32xi32, #tpu.memory_space<smem>>
      %c0_i32_120 = arith.constant 0 : i32
      %c0_i32_121 = arith.constant 0 : i32
      %c0_i32_122 = arith.constant 0 : i32
      %182 = tpu.memref_slice %arg2[%181, %c0_i32_122] : memref<16x256xf32, #tpu.memory_space<any>> -> memref<1x256xf32, #tpu.memory_space<any>>
      %c9_i32_123 = arith.constant 9 : i32
      %c0_i32_124 = arith.constant 0 : i32
      %183 = tpu.memref_slice %arg5[%c0_i32_120, %c9_i32_123, %c0_i32_124] : memref<2x16x256xf32, #tpu.memory_space<vmem>> -> memref<1x1x256xf32, #tpu.memory_space<vmem>>
      %184 = tpu.memref_squeeze %183 : memref<1x1x256xf32, #tpu.memory_space<vmem>> -> memref<1x256xf32, #tpu.memory_space<vmem>>
      %185 = tpu.memref_slice %arg7[%c0_i32_121] : memref<2x!tpu.dma_semaphore, #tpu.memory_space<semaphore_mem>> -> memref<1x!tpu.dma_semaphore, #tpu.memory_space<semaphore_mem>>
      %186 = tpu.memref_squeeze %185 : memref<1x!tpu.dma_semaphore, #tpu.memory_space<semaphore_mem>> -> memref<!tpu.dma_semaphore, #tpu.memory_space<semaphore_mem>>
      tpu.enqueue_dma source(%182 : memref<1x256xf32, #tpu.memory_space<any>>) target(%184 : memref<1x256xf32, #tpu.memory_space<vmem>>) target_semaphore(%186 : memref<!tpu.dma_semaphore, #tpu.memory_space<semaphore_mem>>)
      %c10 = arith.constant 10 : index
      %187 = memref.load %arg1[%c10] : memref<32xi32, #tpu.memory_space<smem>>
      %c0_i32_125 = arith.constant 0 : i32
      %c0_i32_126 = arith.constant 0 : i32
      %c0_i32_127 = arith.constant 0 : i32
      %188 = tpu.memref_slice %arg2[%187, %c0_i32_127] : memref<16x256xf32, #tpu.memory_space<any>> -> memref<1x256xf32, #tpu.memory_space<any>>
      %c10_i32_128 = arith.constant 10 : i32
      %c0_i32_129 = arith.constant 0 : i32
      %189 = tpu.memref_slice %arg5[%c0_i32_125, %c10_i32_128, %c0_i32_129] : memref<2x16x256xf32, #tpu.memory_space<vmem>> -> memref<1x1x256xf32, #tpu.memory_space<vmem>>
      %190 = tpu.memref_squeeze %189 : memref<1x1x256xf32, #tpu.memory_space<vmem>> -> memref<1x256xf32, #tpu.memory_space<vmem>>
      %191 = tpu.memref_slice %arg7[%c0_i32_126] : memref<2x!tpu.dma_semaphore, #tpu.memory_space<semaphore_mem>> -> memref<1x!tpu.dma_semaphore, #tpu.memory_space<semaphore_mem>>
      %192 = tpu.memref_squeeze %191 : memref<1x!tpu.dma_semaphore, #tpu.memory_space<semaphore_mem>> -> memref<!tpu.dma_semaphore, #tpu.memory_space<semaphore_mem>>
      tpu.enqueue_dma source(%188 : memref<1x256xf32, #tpu.memory_space<any>>) target(%190 : memref<1x256xf32, #tpu.memory_space<vmem>>) target_semaphore(%192 : memref<!tpu.dma_semaphore, #tpu.memory_space<semaphore_mem>>)
      %c11 = arith.constant 11 : index
      %193 = memref.load %arg1[%c11] : memref<32xi32, #tpu.memory_space<smem>>
      %c0_i32_130 = arith.constant 0 : i32
      %c0_i32_131 = arith.constant 0 : i32
      %c0_i32_132 = arith.constant 0 : i32
      %194 = tpu.memref_slice %arg2[%193, %c0_i32_132] : memref<16x256xf32, #tpu.memory_space<any>> -> memref<1x256xf32, #tpu.memory_space<any>>
      %c11_i32_133 = arith.constant 11 : i32
      %c0_i32_134 = arith.constant 0 : i32
      %195 = tpu.memref_slice %arg5[%c0_i32_130, %c11_i32_133, %c0_i32_134] : memref<2x16x256xf32, #tpu.memory_space<vmem>> -> memref<1x1x256xf32, #tpu.memory_space<vmem>>
      %196 = tpu.memref_squeeze %195 : memref<1x1x256xf32, #tpu.memory_space<vmem>> -> memref<1x256xf32, #tpu.memory_space<vmem>>
      %197 = tpu.memref_slice %arg7[%c0_i32_131] : memref<2x!tpu.dma_semaphore, #tpu.memory_space<semaphore_mem>> -> memref<1x!tpu.dma_semaphore, #tpu.memory_space<semaphore_mem>>
      %198 = tpu.memref_squeeze %197 : memref<1x!tpu.dma_semaphore, #tpu.memory_space<semaphore_mem>> -> memref<!tpu.dma_semaphore, #tpu.memory_space<semaphore_mem>>
      tpu.enqueue_dma source(%194 : memref<1x256xf32, #tpu.memory_space<any>>) target(%196 : memref<1x256xf32, #tpu.memory_space<vmem>>) target_semaphore(%198 : memref<!tpu.dma_semaphore, #tpu.memory_space<semaphore_mem>>)
      %c12 = arith.constant 12 : index
      %199 = memref.load %arg1[%c12] : memref<32xi32, #tpu.memory_space<smem>>
      %c0_i32_135 = arith.constant 0 : i32
      %c0_i32_136 = arith.constant 0 : i32
      %c0_i32_137 = arith.constant 0 : i32
      %200 = tpu.memref_slice %arg2[%199, %c0_i32_137] : memref<16x256xf32, #tpu.memory_space<any>> -> memref<1x256xf32, #tpu.memory_space<any>>
      %c12_i32_138 = arith.constant 12 : i32
      %c0_i32_139 = arith.constant 0 : i32
      %201 = tpu.memref_slice %arg5[%c0_i32_135, %c12_i32_138, %c0_i32_139] : memref<2x16x256xf32, #tpu.memory_space<vmem>> -> memref<1x1x256xf32, #tpu.memory_space<vmem>>
      %202 = tpu.memref_squeeze %201 : memref<1x1x256xf32, #tpu.memory_space<vmem>> -> memref<1x256xf32, #tpu.memory_space<vmem>>
      %203 = tpu.memref_slice %arg7[%c0_i32_136] : memref<2x!tpu.dma_semaphore, #tpu.memory_space<semaphore_mem>> -> memref<1x!tpu.dma_semaphore, #tpu.memory_space<semaphore_mem>>
      %204 = tpu.memref_squeeze %203 : memref<1x!tpu.dma_semaphore, #tpu.memory_space<semaphore_mem>> -> memref<!tpu.dma_semaphore, #tpu.memory_space<semaphore_mem>>
      tpu.enqueue_dma source(%200 : memref<1x256xf32, #tpu.memory_space<any>>) target(%202 : memref<1x256xf32, #tpu.memory_space<vmem>>) target_semaphore(%204 : memref<!tpu.dma_semaphore, #tpu.memory_space<semaphore_mem>>)
      %c13 = arith.constant 13 : index
      %205 = memref.load %arg1[%c13] : memref<32xi32, #tpu.memory_space<smem>>
      %c0_i32_140 = arith.constant 0 : i32
      %c0_i32_141 = arith.constant 0 : i32
      %c0_i32_142 = arith.constant 0 : i32
      %206 = tpu.memref_slice %arg2[%205, %c0_i32_142] : memref<16x256xf32, #tpu.memory_space<any>> -> memref<1x256xf32, #tpu.memory_space<any>>
      %c13_i32_143 = arith.constant 13 : i32
      %c0_i32_144 = arith.constant 0 : i32
      %207 = tpu.memref_slice %arg5[%c0_i32_140, %c13_i32_143, %c0_i32_144] : memref<2x16x256xf32, #tpu.memory_space<vmem>> -> memref<1x1x256xf32, #tpu.memory_space<vmem>>
      %208 = tpu.memref_squeeze %207 : memref<1x1x256xf32, #tpu.memory_space<vmem>> -> memref<1x256xf32, #tpu.memory_space<vmem>>
      %209 = tpu.memref_slice %arg7[%c0_i32_141] : memref<2x!tpu.dma_semaphore, #tpu.memory_space<semaphore_mem>> -> memref<1x!tpu.dma_semaphore, #tpu.memory_space<semaphore_mem>>
      %210 = tpu.memref_squeeze %209 : memref<1x!tpu.dma_semaphore, #tpu.memory_space<semaphore_mem>> -> memref<!tpu.dma_semaphore, #tpu.memory_space<semaphore_mem>>
      tpu.enqueue_dma source(%206 : memref<1x256xf32, #tpu.memory_space<any>>) target(%208 : memref<1x256xf32, #tpu.memory_space<vmem>>) target_semaphore(%210 : memref<!tpu.dma_semaphore, #tpu.memory_space<semaphore_mem>>)
      %c14 = arith.constant 14 : index
      %211 = memref.load %arg1[%c14] : memref<32xi32, #tpu.memory_space<smem>>
      %c0_i32_145 = arith.constant 0 : i32
      %c0_i32_146 = arith.constant 0 : i32
      %c0_i32_147 = arith.constant 0 : i32
      %212 = tpu.memref_slice %arg2[%211, %c0_i32_147] : memref<16x256xf32, #tpu.memory_space<any>> -> memref<1x256xf32, #tpu.memory_space<any>>
      %c14_i32_148 = arith.constant 14 : i32
      %c0_i32_149 = arith.constant 0 : i32
      %213 = tpu.memref_slice %arg5[%c0_i32_145, %c14_i32_148, %c0_i32_149] : memref<2x16x256xf32, #tpu.memory_space<vmem>> -> memref<1x1x256xf32, #tpu.memory_space<vmem>>
      %214 = tpu.memref_squeeze %213 : memref<1x1x256xf32, #tpu.memory_space<vmem>> -> memref<1x256xf32, #tpu.memory_space<vmem>>
      %215 = tpu.memref_slice %arg7[%c0_i32_146] : memref<2x!tpu.dma_semaphore, #tpu.memory_space<semaphore_mem>> -> memref<1x!tpu.dma_semaphore, #tpu.memory_space<semaphore_mem>>
      %216 = tpu.memref_squeeze %215 : memref<1x!tpu.dma_semaphore, #tpu.memory_space<semaphore_mem>> -> memref<!tpu.dma_semaphore, #tpu.memory_space<semaphore_mem>>
      tpu.enqueue_dma source(%212 : memref<1x256xf32, #tpu.memory_space<any>>) target(%214 : memref<1x256xf32, #tpu.memory_space<vmem>>) target_semaphore(%216 : memref<!tpu.dma_semaphore, #tpu.memory_space<semaphore_mem>>)
      %c15 = arith.constant 15 : index
      %217 = memref.load %arg1[%c15] : memref<32xi32, #tpu.memory_space<smem>>
      %c0_i32_150 = arith.constant 0 : i32
      %c0_i32_151 = arith.constant 0 : i32
      %c0_i32_152 = arith.constant 0 : i32
      %218 = tpu.memref_slice %arg2[%217, %c0_i32_152] : memref<16x256xf32, #tpu.memory_space<any>> -> memref<1x256xf32, #tpu.memory_space<any>>
      %c15_i32_153 = arith.constant 15 : i32
      %c0_i32_154 = arith.constant 0 : i32
      %219 = tpu.memref_slice %arg5[%c0_i32_150, %c15_i32_153, %c0_i32_154] : memref<2x16x256xf32, #tpu.memory_space<vmem>> -> memref<1x1x256xf32, #tpu.memory_space<vmem>>
      %220 = tpu.memref_squeeze %219 : memref<1x1x256xf32, #tpu.memory_space<vmem>> -> memref<1x256xf32, #tpu.memory_space<vmem>>
      %221 = tpu.memref_slice %arg7[%c0_i32_151] : memref<2x!tpu.dma_semaphore, #tpu.memory_space<semaphore_mem>> -> memref<1x!tpu.dma_semaphore, #tpu.memory_space<semaphore_mem>>
      %222 = tpu.memref_squeeze %221 : memref<1x!tpu.dma_semaphore, #tpu.memory_space<semaphore_mem>> -> memref<!tpu.dma_semaphore, #tpu.memory_space<semaphore_mem>>
      tpu.enqueue_dma source(%218 : memref<1x256xf32, #tpu.memory_space<any>>) target(%220 : memref<1x256xf32, #tpu.memory_space<vmem>>) target_semaphore(%222 : memref<!tpu.dma_semaphore, #tpu.memory_space<semaphore_mem>>)
    } else {
    }
    %c1_i32_5 = arith.constant 1 : i32
    %13 = arith.addi %arg0, %c1_i32_5 : i32
    %c1_i32_6 = arith.constant 1 : i32
    %14 = arith.cmpi slt, %13, %c1_i32_6 : i32
    %15 = arith.extui %14 : i1 to i32
    %c0_i32_7 = arith.constant 0 : i32
    %16 = arith.cmpi ne, %15, %c0_i32_7 : i32
    scf.if %16 {
      %c1_i32_71 = arith.constant 1 : i32
      %125 = arith.addi %arg0, %c1_i32_71 : i32
      %c1_i32_72 = arith.constant 1 : i32
      %126 = arith.addi %arg0, %c1_i32_72 : i32
      %c2_i32_73 = arith.constant 2 : i32
      %c0_i32_74 = arith.constant 0 : i32
      %127 = arith.cmpi eq, %c2_i32_73, %c0_i32_74 : i32
      %c1_i32_75 = arith.constant 1 : i32
      %128 = arith.select %127, %c1_i32_75, %c2_i32_73 : i32
      %129 = arith.remsi %126, %128 : i32
      %c0_i32_76 = arith.constant 0 : i32
      %130 = arith.cmpi ne, %129, %c0_i32_76 : i32
      %c0_i32_77 = arith.constant 0 : i32
      %131 = arith.cmpi slt, %129, %c0_i32_77 : i32
      %c0_i32_78 = arith.constant 0 : i32
      %132 = arith.cmpi slt, %128, %c0_i32_78 : i32
      %133 = arith.xori %131, %132 : i1
      %134 = arith.andi %133, %130 : i1
      %135 = arith.addi %129, %128 : i32
      %136 = arith.select %134, %135, %129 : i32
      %c16_i32_79 = arith.constant 16 : i32
      %137 = arith.muli %125, %c16_i32_79 : i32
      %c0_i32_80 = arith.constant 0 : i32
      %138 = arith.addi %137, %c0_i32_80 : i32
      %139 = arith.index_cast %138 : i32 to index
      %140 = memref.load %arg1[%139] : memref<32xi32, #tpu.memory_space<smem>>
      %c0_i32_81 = arith.constant 0 : i32
      %141 = tpu.memref_slice %arg2[%140, %c0_i32_81] : memref<16x256xf32, #tpu.memory_space<any>> -> memref<1x256xf32, #tpu.memory_space<any>>
      %c0_i32_82 = arith.constant 0 : i32
      %c0_i32_83 = arith.constant 0 : i32
      %142 = tpu.memref_slice %arg5[%136, %c0_i32_82, %c0_i32_83] : memref<2x16x256xf32, #tpu.memory_space<vmem>> -> memref<1x1x256xf32, #tpu.memory_space<vmem>>
      %143 = tpu.memref_squeeze %142 : memref<1x1x256xf32, #tpu.memory_space<vmem>> -> memref<1x256xf32, #tpu.memory_space<vmem>>
      %144 = tpu.memref_slice %arg7[%136] : memref<2x!tpu.dma_semaphore, #tpu.memory_space<semaphore_mem>> -> memref<1x!tpu.dma_semaphore, #tpu.memory_space<semaphore_mem>>
      %145 = tpu.memref_squeeze %144 : memref<1x!tpu.dma_semaphore, #tpu.memory_space<semaphore_mem>> -> memref<!tpu.dma_semaphore, #tpu.memory_space<semaphore_mem>>
      tpu.enqueue_dma source(%141 : memref<1x256xf32, #tpu.memory_space<any>>) target(%143 : memref<1x256xf32, #tpu.memory_space<vmem>>) target_semaphore(%145 : memref<!tpu.dma_semaphore, #tpu.memory_space<semaphore_mem>>)
      %c1_i32_84 = arith.constant 1 : i32
      %146 = arith.addi %137, %c1_i32_84 : i32
      %147 = arith.index_cast %146 : i32 to index
      %148 = memref.load %arg1[%147] : memref<32xi32, #tpu.memory_space<smem>>
      %c0_i32_85 = arith.constant 0 : i32
      %149 = tpu.memref_slice %arg2[%148, %c0_i32_85] : memref<16x256xf32, #tpu.memory_space<any>> -> memref<1x256xf32, #tpu.memory_space<any>>
      %c1_i32_86 = arith.constant 1 : i32
      %c0_i32_87 = arith.constant 0 : i32
      %150 = tpu.memref_slice %arg5[%136, %c1_i32_86, %c0_i32_87] : memref<2x16x256xf32, #tpu.memory_space<vmem>> -> memref<1x1x256xf32, #tpu.memory_space<vmem>>
      %151 = tpu.memref_squeeze %150 : memref<1x1x256xf32, #tpu.memory_space<vmem>> -> memref<1x256xf32, #tpu.memory_space<vmem>>
      %152 = tpu.memref_slice %arg7[%136] : memref<2x!tpu.dma_semaphore, #tpu.memory_space<semaphore_mem>> -> memref<1x!tpu.dma_semaphore, #tpu.memory_space<semaphore_mem>>
      %153 = tpu.memref_squeeze %152 : memref<1x!tpu.dma_semaphore, #tpu.memory_space<semaphore_mem>> -> memref<!tpu.dma_semaphore, #tpu.memory_space<semaphore_mem>>
      tpu.enqueue_dma source(%149 : memref<1x256xf32, #tpu.memory_space<any>>) target(%151 : memref<1x256xf32, #tpu.memory_space<vmem>>) target_semaphore(%153 : memref<!tpu.dma_semaphore, #tpu.memory_space<semaphore_mem>>)
      %c2_i32_88 = arith.constant 2 : i32
      %154 = arith.addi %137, %c2_i32_88 : i32
      %155 = arith.index_cast %154 : i32 to index
      %156 = memref.load %arg1[%155] : memref<32xi32, #tpu.memory_space<smem>>
      %c0_i32_89 = arith.constant 0 : i32
      %157 = tpu.memref_slice %arg2[%156, %c0_i32_89] : memref<16x256xf32, #tpu.memory_space<any>> -> memref<1x256xf32, #tpu.memory_space<any>>
      %c2_i32_90 = arith.constant 2 : i32
      %c0_i32_91 = arith.constant 0 : i32
      %158 = tpu.memref_slice %arg5[%136, %c2_i32_90, %c0_i32_91] : memref<2x16x256xf32, #tpu.memory_space<vmem>> -> memref<1x1x256xf32, #tpu.memory_space<vmem>>
      %159 = tpu.memref_squeeze %158 : memref<1x1x256xf32, #tpu.memory_space<vmem>> -> memref<1x256xf32, #tpu.memory_space<vmem>>
      %160 = tpu.memref_slice %arg7[%136] : memref<2x!tpu.dma_semaphore, #tpu.memory_space<semaphore_mem>> -> memref<1x!tpu.dma_semaphore, #tpu.memory_space<semaphore_mem>>
      %161 = tpu.memref_squeeze %160 : memref<1x!tpu.dma_semaphore, #tpu.memory_space<semaphore_mem>> -> memref<!tpu.dma_semaphore, #tpu.memory_space<semaphore_mem>>
      tpu.enqueue_dma source(%157 : memref<1x256xf32, #tpu.memory_space<any>>) target(%159 : memref<1x256xf32, #tpu.memory_space<vmem>>) target_semaphore(%161 : memref<!tpu.dma_semaphore, #tpu.memory_space<semaphore_mem>>)
      %c3_i32_92 = arith.constant 3 : i32
      %162 = arith.addi %137, %c3_i32_92 : i32
      %163 = arith.index_cast %162 : i32 to index
      %164 = memref.load %arg1[%163] : memref<32xi32, #tpu.memory_space<smem>>
      %c0_i32_93 = arith.constant 0 : i32
      %165 = tpu.memref_slice %arg2[%164, %c0_i32_93] : memref<16x256xf32, #tpu.memory_space<any>> -> memref<1x256xf32, #tpu.memory_space<any>>
      %c3_i32_94 = arith.constant 3 : i32
      %c0_i32_95 = arith.constant 0 : i32
      %166 = tpu.memref_slice %arg5[%136, %c3_i32_94, %c0_i32_95] : memref<2x16x256xf32, #tpu.memory_space<vmem>> -> memref<1x1x256xf32, #tpu.memory_space<vmem>>
      %167 = tpu.memref_squeeze %166 : memref<1x1x256xf32, #tpu.memory_space<vmem>> -> memref<1x256xf32, #tpu.memory_space<vmem>>
      %168 = tpu.memref_slice %arg7[%136] : memref<2x!tpu.dma_semaphore, #tpu.memory_space<semaphore_mem>> -> memref<1x!tpu.dma_semaphore, #tpu.memory_space<semaphore_mem>>
      %169 = tpu.memref_squeeze %168 : memref<1x!tpu.dma_semaphore, #tpu.memory_space<semaphore_mem>> -> memref<!tpu.dma_semaphore, #tpu.memory_space<semaphore_mem>>
      tpu.enqueue_dma source(%165 : memref<1x256xf32, #tpu.memory_space<any>>) target(%167 : memref<1x256xf32, #tpu.memory_space<vmem>>) target_semaphore(%169 : memref<!tpu.dma_semaphore, #tpu.memory_space<semaphore_mem>>)
      %c4_i32_96 = arith.constant 4 : i32
      %170 = arith.addi %137, %c4_i32_96 : i32
      %171 = arith.index_cast %170 : i32 to index
      %172 = memref.load %arg1[%171] : memref<32xi32, #tpu.memory_space<smem>>
      %c0_i32_97 = arith.constant 0 : i32
      %173 = tpu.memref_slice %arg2[%172, %c0_i32_97] : memref<16x256xf32, #tpu.memory_space<any>> -> memref<1x256xf32, #tpu.memory_space<any>>
      %c4_i32_98 = arith.constant 4 : i32
      %c0_i32_99 = arith.constant 0 : i32
      %174 = tpu.memref_slice %arg5[%136, %c4_i32_98, %c0_i32_99] : memref<2x16x256xf32, #tpu.memory_space<vmem>> -> memref<1x1x256xf32, #tpu.memory_space<vmem>>
      %175 = tpu.memref_squeeze %174 : memref<1x1x256xf32, #tpu.memory_space<vmem>> -> memref<1x256xf32, #tpu.memory_space<vmem>>
      %176 = tpu.memref_slice %arg7[%136] : memref<2x!tpu.dma_semaphore, #tpu.memory_space<semaphore_mem>> -> memref<1x!tpu.dma_semaphore, #tpu.memory_space<semaphore_mem>>
      %177 = tpu.memref_squeeze %176 : memref<1x!tpu.dma_semaphore, #tpu.memory_space<semaphore_mem>> -> memref<!tpu.dma_semaphore, #tpu.memory_space<semaphore_mem>>
      tpu.enqueue_dma source(%173 : memref<1x256xf32, #tpu.memory_space<any>>) target(%175 : memref<1x256xf32, #tpu.memory_space<vmem>>) target_semaphore(%177 : memref<!tpu.dma_semaphore, #tpu.memory_space<semaphore_mem>>)
      %c5_i32_100 = arith.constant 5 : i32
      %178 = arith.addi %137, %c5_i32_100 : i32
      %179 = arith.index_cast %178 : i32 to index
      %180 = memref.load %arg1[%179] : memref<32xi32, #tpu.memory_space<smem>>
      %c0_i32_101 = arith.constant 0 : i32
      %181 = tpu.memref_slice %arg2[%180, %c0_i32_101] : memref<16x256xf32, #tpu.memory_space<any>> -> memref<1x256xf32, #tpu.memory_space<any>>
      %c5_i32_102 = arith.constant 5 : i32
      %c0_i32_103 = arith.constant 0 : i32
      %182 = tpu.memref_slice %arg5[%136, %c5_i32_102, %c0_i32_103] : memref<2x16x256xf32, #tpu.memory_space<vmem>> -> memref<1x1x256xf32, #tpu.memory_space<vmem>>
      %183 = tpu.memref_squeeze %182 : memref<1x1x256xf32, #tpu.memory_space<vmem>> -> memref<1x256xf32, #tpu.memory_space<vmem>>
      %184 = tpu.memref_slice %arg7[%136] : memref<2x!tpu.dma_semaphore, #tpu.memory_space<semaphore_mem>> -> memref<1x!tpu.dma_semaphore, #tpu.memory_space<semaphore_mem>>
      %185 = tpu.memref_squeeze %184 : memref<1x!tpu.dma_semaphore, #tpu.memory_space<semaphore_mem>> -> memref<!tpu.dma_semaphore, #tpu.memory_space<semaphore_mem>>
      tpu.enqueue_dma source(%181 : memref<1x256xf32, #tpu.memory_space<any>>) target(%183 : memref<1x256xf32, #tpu.memory_space<vmem>>) target_semaphore(%185 : memref<!tpu.dma_semaphore, #tpu.memory_space<semaphore_mem>>)
      %c6_i32_104 = arith.constant 6 : i32
      %186 = arith.addi %137, %c6_i32_104 : i32
      %187 = arith.index_cast %186 : i32 to index
      %188 = memref.load %arg1[%187] : memref<32xi32, #tpu.memory_space<smem>>
      %c0_i32_105 = arith.constant 0 : i32
      %189 = tpu.memref_slice %arg2[%188, %c0_i32_105] : memref<16x256xf32, #tpu.memory_space<any>> -> memref<1x256xf32, #tpu.memory_space<any>>
      %c6_i32_106 = arith.constant 6 : i32
      %c0_i32_107 = arith.constant 0 : i32
      %190 = tpu.memref_slice %arg5[%136, %c6_i32_106, %c0_i32_107] : memref<2x16x256xf32, #tpu.memory_space<vmem>> -> memref<1x1x256xf32, #tpu.memory_space<vmem>>
      %191 = tpu.memref_squeeze %190 : memref<1x1x256xf32, #tpu.memory_space<vmem>> -> memref<1x256xf32, #tpu.memory_space<vmem>>
      %192 = tpu.memref_slice %arg7[%136] : memref<2x!tpu.dma_semaphore, #tpu.memory_space<semaphore_mem>> -> memref<1x!tpu.dma_semaphore, #tpu.memory_space<semaphore_mem>>
      %193 = tpu.memref_squeeze %192 : memref<1x!tpu.dma_semaphore, #tpu.memory_space<semaphore_mem>> -> memref<!tpu.dma_semaphore, #tpu.memory_space<semaphore_mem>>
      tpu.enqueue_dma source(%189 : memref<1x256xf32, #tpu.memory_space<any>>) target(%191 : memref<1x256xf32, #tpu.memory_space<vmem>>) target_semaphore(%193 : memref<!tpu.dma_semaphore, #tpu.memory_space<semaphore_mem>>)
      %c7_i32_108 = arith.constant 7 : i32
      %194 = arith.addi %137, %c7_i32_108 : i32
      %195 = arith.index_cast %194 : i32 to index
      %196 = memref.load %arg1[%195] : memref<32xi32, #tpu.memory_space<smem>>
      %c0_i32_109 = arith.constant 0 : i32
      %197 = tpu.memref_slice %arg2[%196, %c0_i32_109] : memref<16x256xf32, #tpu.memory_space<any>> -> memref<1x256xf32, #tpu.memory_space<any>>
      %c7_i32_110 = arith.constant 7 : i32
      %c0_i32_111 = arith.constant 0 : i32
      %198 = tpu.memref_slice %arg5[%136, %c7_i32_110, %c0_i32_111] : memref<2x16x256xf32, #tpu.memory_space<vmem>> -> memref<1x1x256xf32, #tpu.memory_space<vmem>>
      %199 = tpu.memref_squeeze %198 : memref<1x1x256xf32, #tpu.memory_space<vmem>> -> memref<1x256xf32, #tpu.memory_space<vmem>>
      %200 = tpu.memref_slice %arg7[%136] : memref<2x!tpu.dma_semaphore, #tpu.memory_space<semaphore_mem>> -> memref<1x!tpu.dma_semaphore, #tpu.memory_space<semaphore_mem>>
      %201 = tpu.memref_squeeze %200 : memref<1x!tpu.dma_semaphore, #tpu.memory_space<semaphore_mem>> -> memref<!tpu.dma_semaphore, #tpu.memory_space<semaphore_mem>>
      tpu.enqueue_dma source(%197 : memref<1x256xf32, #tpu.memory_space<any>>) target(%199 : memref<1x256xf32, #tpu.memory_space<vmem>>) target_semaphore(%201 : memref<!tpu.dma_semaphore, #tpu.memory_space<semaphore_mem>>)
      %c8_i32_112 = arith.constant 8 : i32
      %202 = arith.addi %137, %c8_i32_112 : i32
      %203 = arith.index_cast %202 : i32 to index
      %204 = memref.load %arg1[%203] : memref<32xi32, #tpu.memory_space<smem>>
      %c0_i32_113 = arith.constant 0 : i32
      %205 = tpu.memref_slice %arg2[%204, %c0_i32_113] : memref<16x256xf32, #tpu.memory_space<any>> -> memref<1x256xf32, #tpu.memory_space<any>>
      %c8_i32_114 = arith.constant 8 : i32
      %c0_i32_115 = arith.constant 0 : i32
      %206 = tpu.memref_slice %arg5[%136, %c8_i32_114, %c0_i32_115] : memref<2x16x256xf32, #tpu.memory_space<vmem>> -> memref<1x1x256xf32, #tpu.memory_space<vmem>>
      %207 = tpu.memref_squeeze %206 : memref<1x1x256xf32, #tpu.memory_space<vmem>> -> memref<1x256xf32, #tpu.memory_space<vmem>>
      %208 = tpu.memref_slice %arg7[%136] : memref<2x!tpu.dma_semaphore, #tpu.memory_space<semaphore_mem>> -> memref<1x!tpu.dma_semaphore, #tpu.memory_space<semaphore_mem>>
      %209 = tpu.memref_squeeze %208 : memref<1x!tpu.dma_semaphore, #tpu.memory_space<semaphore_mem>> -> memref<!tpu.dma_semaphore, #tpu.memory_space<semaphore_mem>>
      tpu.enqueue_dma source(%205 : memref<1x256xf32, #tpu.memory_space<any>>) target(%207 : memref<1x256xf32, #tpu.memory_space<vmem>>) target_semaphore(%209 : memref<!tpu.dma_semaphore, #tpu.memory_space<semaphore_mem>>)
      %c9_i32_116 = arith.constant 9 : i32
      %210 = arith.addi %137, %c9_i32_116 : i32
      %211 = arith.index_cast %210 : i32 to index
      %212 = memref.load %arg1[%211] : memref<32xi32, #tpu.memory_space<smem>>
      %c0_i32_117 = arith.constant 0 : i32
      %213 = tpu.memref_slice %arg2[%212, %c0_i32_117] : memref<16x256xf32, #tpu.memory_space<any>> -> memref<1x256xf32, #tpu.memory_space<any>>
      %c9_i32_118 = arith.constant 9 : i32
      %c0_i32_119 = arith.constant 0 : i32
      %214 = tpu.memref_slice %arg5[%136, %c9_i32_118, %c0_i32_119] : memref<2x16x256xf32, #tpu.memory_space<vmem>> -> memref<1x1x256xf32, #tpu.memory_space<vmem>>
      %215 = tpu.memref_squeeze %214 : memref<1x1x256xf32, #tpu.memory_space<vmem>> -> memref<1x256xf32, #tpu.memory_space<vmem>>
      %216 = tpu.memref_slice %arg7[%136] : memref<2x!tpu.dma_semaphore, #tpu.memory_space<semaphore_mem>> -> memref<1x!tpu.dma_semaphore, #tpu.memory_space<semaphore_mem>>
      %217 = tpu.memref_squeeze %216 : memref<1x!tpu.dma_semaphore, #tpu.memory_space<semaphore_mem>> -> memref<!tpu.dma_semaphore, #tpu.memory_space<semaphore_mem>>
      tpu.enqueue_dma source(%213 : memref<1x256xf32, #tpu.memory_space<any>>) target(%215 : memref<1x256xf32, #tpu.memory_space<vmem>>) target_semaphore(%217 : memref<!tpu.dma_semaphore, #tpu.memory_space<semaphore_mem>>)
      %c10_i32_120 = arith.constant 10 : i32
      %218 = arith.addi %137, %c10_i32_120 : i32
      %219 = arith.index_cast %218 : i32 to index
      %220 = memref.load %arg1[%219] : memref<32xi32, #tpu.memory_space<smem>>
      %c0_i32_121 = arith.constant 0 : i32
      %221 = tpu.memref_slice %arg2[%220, %c0_i32_121] : memref<16x256xf32, #tpu.memory_space<any>> -> memref<1x256xf32, #tpu.memory_space<any>>
      %c10_i32_122 = arith.constant 10 : i32
      %c0_i32_123 = arith.constant 0 : i32
      %222 = tpu.memref_slice %arg5[%136, %c10_i32_122, %c0_i32_123] : memref<2x16x256xf32, #tpu.memory_space<vmem>> -> memref<1x1x256xf32, #tpu.memory_space<vmem>>
      %223 = tpu.memref_squeeze %222 : memref<1x1x256xf32, #tpu.memory_space<vmem>> -> memref<1x256xf32, #tpu.memory_space<vmem>>
      %224 = tpu.memref_slice %arg7[%136] : memref<2x!tpu.dma_semaphore, #tpu.memory_space<semaphore_mem>> -> memref<1x!tpu.dma_semaphore, #tpu.memory_space<semaphore_mem>>
      %225 = tpu.memref_squeeze %224 : memref<1x!tpu.dma_semaphore, #tpu.memory_space<semaphore_mem>> -> memref<!tpu.dma_semaphore, #tpu.memory_space<semaphore_mem>>
      tpu.enqueue_dma source(%221 : memref<1x256xf32, #tpu.memory_space<any>>) target(%223 : memref<1x256xf32, #tpu.memory_space<vmem>>) target_semaphore(%225 : memref<!tpu.dma_semaphore, #tpu.memory_space<semaphore_mem>>)
      %c11_i32_124 = arith.constant 11 : i32
      %226 = arith.addi %137, %c11_i32_124 : i32
      %227 = arith.index_cast %226 : i32 to index
      %228 = memref.load %arg1[%227] : memref<32xi32, #tpu.memory_space<smem>>
      %c0_i32_125 = arith.constant 0 : i32
      %229 = tpu.memref_slice %arg2[%228, %c0_i32_125] : memref<16x256xf32, #tpu.memory_space<any>> -> memref<1x256xf32, #tpu.memory_space<any>>
      %c11_i32_126 = arith.constant 11 : i32
      %c0_i32_127 = arith.constant 0 : i32
      %230 = tpu.memref_slice %arg5[%136, %c11_i32_126, %c0_i32_127] : memref<2x16x256xf32, #tpu.memory_space<vmem>> -> memref<1x1x256xf32, #tpu.memory_space<vmem>>
      %231 = tpu.memref_squeeze %230 : memref<1x1x256xf32, #tpu.memory_space<vmem>> -> memref<1x256xf32, #tpu.memory_space<vmem>>
      %232 = tpu.memref_slice %arg7[%136] : memref<2x!tpu.dma_semaphore, #tpu.memory_space<semaphore_mem>> -> memref<1x!tpu.dma_semaphore, #tpu.memory_space<semaphore_mem>>
      %233 = tpu.memref_squeeze %232 : memref<1x!tpu.dma_semaphore, #tpu.memory_space<semaphore_mem>> -> memref<!tpu.dma_semaphore, #tpu.memory_space<semaphore_mem>>
      tpu.enqueue_dma source(%229 : memref<1x256xf32, #tpu.memory_space<any>>) target(%231 : memref<1x256xf32, #tpu.memory_space<vmem>>) target_semaphore(%233 : memref<!tpu.dma_semaphore, #tpu.memory_space<semaphore_mem>>)
      %c12_i32_128 = arith.constant 12 : i32
      %234 = arith.addi %137, %c12_i32_128 : i32
      %235 = arith.index_cast %234 : i32 to index
      %236 = memref.load %arg1[%235] : memref<32xi32, #tpu.memory_space<smem>>
      %c0_i32_129 = arith.constant 0 : i32
      %237 = tpu.memref_slice %arg2[%236, %c0_i32_129] : memref<16x256xf32, #tpu.memory_space<any>> -> memref<1x256xf32, #tpu.memory_space<any>>
      %c12_i32_130 = arith.constant 12 : i32
      %c0_i32_131 = arith.constant 0 : i32
      %238 = tpu.memref_slice %arg5[%136, %c12_i32_130, %c0_i32_131] : memref<2x16x256xf32, #tpu.memory_space<vmem>> -> memref<1x1x256xf32, #tpu.memory_space<vmem>>
      %239 = tpu.memref_squeeze %238 : memref<1x1x256xf32, #tpu.memory_space<vmem>> -> memref<1x256xf32, #tpu.memory_space<vmem>>
      %240 = tpu.memref_slice %arg7[%136] : memref<2x!tpu.dma_semaphore, #tpu.memory_space<semaphore_mem>> -> memref<1x!tpu.dma_semaphore, #tpu.memory_space<semaphore_mem>>
      %241 = tpu.memref_squeeze %240 : memref<1x!tpu.dma_semaphore, #tpu.memory_space<semaphore_mem>> -> memref<!tpu.dma_semaphore, #tpu.memory_space<semaphore_mem>>
      tpu.enqueue_dma source(%237 : memref<1x256xf32, #tpu.memory_space<any>>) target(%239 : memref<1x256xf32, #tpu.memory_space<vmem>>) target_semaphore(%241 : memref<!tpu.dma_semaphore, #tpu.memory_space<semaphore_mem>>)
      %c13_i32_132 = arith.constant 13 : i32
      %242 = arith.addi %137, %c13_i32_132 : i32
      %243 = arith.index_cast %242 : i32 to index
      %244 = memref.load %arg1[%243] : memref<32xi32, #tpu.memory_space<smem>>
      %c0_i32_133 = arith.constant 0 : i32
      %245 = tpu.memref_slice %arg2[%244, %c0_i32_133] : memref<16x256xf32, #tpu.memory_space<any>> -> memref<1x256xf32, #tpu.memory_space<any>>
      %c13_i32_134 = arith.constant 13 : i32
      %c0_i32_135 = arith.constant 0 : i32
      %246 = tpu.memref_slice %arg5[%136, %c13_i32_134, %c0_i32_135] : memref<2x16x256xf32, #tpu.memory_space<vmem>> -> memref<1x1x256xf32, #tpu.memory_space<vmem>>
      %247 = tpu.memref_squeeze %246 : memref<1x1x256xf32, #tpu.memory_space<vmem>> -> memref<1x256xf32, #tpu.memory_space<vmem>>
      %248 = tpu.memref_slice %arg7[%136] : memref<2x!tpu.dma_semaphore, #tpu.memory_space<semaphore_mem>> -> memref<1x!tpu.dma_semaphore, #tpu.memory_space<semaphore_mem>>
      %249 = tpu.memref_squeeze %248 : memref<1x!tpu.dma_semaphore, #tpu.memory_space<semaphore_mem>> -> memref<!tpu.dma_semaphore, #tpu.memory_space<semaphore_mem>>
      tpu.enqueue_dma source(%245 : memref<1x256xf32, #tpu.memory_space<any>>) target(%247 : memref<1x256xf32, #tpu.memory_space<vmem>>) target_semaphore(%249 : memref<!tpu.dma_semaphore, #tpu.memory_space<semaphore_mem>>)
      %c14_i32_136 = arith.constant 14 : i32
      %250 = arith.addi %137, %c14_i32_136 : i32
      %251 = arith.index_cast %250 : i32 to index
      %252 = memref.load %arg1[%251] : memref<32xi32, #tpu.memory_space<smem>>
      %c0_i32_137 = arith.constant 0 : i32
      %253 = tpu.memref_slice %arg2[%252, %c0_i32_137] : memref<16x256xf32, #tpu.memory_space<any>> -> memref<1x256xf32, #tpu.memory_space<any>>
      %c14_i32_138 = arith.constant 14 : i32
      %c0_i32_139 = arith.constant 0 : i32
      %254 = tpu.memref_slice %arg5[%136, %c14_i32_138, %c0_i32_139] : memref<2x16x256xf32, #tpu.memory_space<vmem>> -> memref<1x1x256xf32, #tpu.memory_space<vmem>>
      %255 = tpu.memref_squeeze %254 : memref<1x1x256xf32, #tpu.memory_space<vmem>> -> memref<1x256xf32, #tpu.memory_space<vmem>>
      %256 = tpu.memref_slice %arg7[%136] : memref<2x!tpu.dma_semaphore, #tpu.memory_space<semaphore_mem>> -> memref<1x!tpu.dma_semaphore, #tpu.memory_space<semaphore_mem>>
      %257 = tpu.memref_squeeze %256 : memref<1x!tpu.dma_semaphore, #tpu.memory_space<semaphore_mem>> -> memref<!tpu.dma_semaphore, #tpu.memory_space<semaphore_mem>>
      tpu.enqueue_dma source(%253 : memref<1x256xf32, #tpu.memory_space<any>>) target(%255 : memref<1x256xf32, #tpu.memory_space<vmem>>) target_semaphore(%257 : memref<!tpu.dma_semaphore, #tpu.memory_space<semaphore_mem>>)
      %c15_i32_140 = arith.constant 15 : i32
      %258 = arith.addi %137, %c15_i32_140 : i32
      %259 = arith.index_cast %258 : i32 to index
      %260 = memref.load %arg1[%259] : memref<32xi32, #tpu.memory_space<smem>>
      %c0_i32_141 = arith.constant 0 : i32
      %261 = tpu.memref_slice %arg2[%260, %c0_i32_141] : memref<16x256xf32, #tpu.memory_space<any>> -> memref<1x256xf32, #tpu.memory_space<any>>
      %c15_i32_142 = arith.constant 15 : i32
      %c0_i32_143 = arith.constant 0 : i32
      %262 = tpu.memref_slice %arg5[%136, %c15_i32_142, %c0_i32_143] : memref<2x16x256xf32, #tpu.memory_space<vmem>> -> memref<1x1x256xf32, #tpu.memory_space<vmem>>
      %263 = tpu.memref_squeeze %262 : memref<1x1x256xf32, #tpu.memory_space<vmem>> -> memref<1x256xf32, #tpu.memory_space<vmem>>
      %264 = tpu.memref_slice %arg7[%136] : memref<2x!tpu.dma_semaphore, #tpu.memory_space<semaphore_mem>> -> memref<1x!tpu.dma_semaphore, #tpu.memory_space<semaphore_mem>>
      %265 = tpu.memref_squeeze %264 : memref<1x!tpu.dma_semaphore, #tpu.memory_space<semaphore_mem>> -> memref<!tpu.dma_semaphore, #tpu.memory_space<semaphore_mem>>
      tpu.enqueue_dma source(%261 : memref<1x256xf32, #tpu.memory_space<any>>) target(%263 : memref<1x256xf32, #tpu.memory_space<vmem>>) target_semaphore(%265 : memref<!tpu.dma_semaphore, #tpu.memory_space<semaphore_mem>>)
    } else {
    }
    %c0_i32_8 = arith.constant 0 : i32
    %c0_i32_9 = arith.constant 0 : i32
    %17 = tpu.memref_slice %arg2[%c0_i32_8, %c0_i32_9] : memref<16x256xf32, #tpu.memory_space<any>> -> memref<1x256xf32, #tpu.memory_space<any>>
    %c0_i32_10 = arith.constant 0 : i32
    %c0_i32_11 = arith.constant 0 : i32
    %18 = tpu.memref_slice %arg5[%9, %c0_i32_10, %c0_i32_11] : memref<2x16x256xf32, #tpu.memory_space<vmem>> -> memref<1x1x256xf32, #tpu.memory_space<vmem>>
    %19 = tpu.memref_squeeze %18 : memref<1x1x256xf32, #tpu.memory_space<vmem>> -> memref<1x256xf32, #tpu.memory_space<vmem>>
    %20 = tpu.memref_slice %arg7[%9] : memref<2x!tpu.dma_semaphore, #tpu.memory_space<semaphore_mem>> -> memref<1x!tpu.dma_semaphore, #tpu.memory_space<semaphore_mem>>
    %21 = tpu.memref_squeeze %20 : memref<1x!tpu.dma_semaphore, #tpu.memory_space<semaphore_mem>> -> memref<!tpu.dma_semaphore, #tpu.memory_space<semaphore_mem>>
    tpu.wait_dma2 semaphore(%21 : memref<!tpu.dma_semaphore, #tpu.memory_space<semaphore_mem>>) src(%17 : memref<1x256xf32, #tpu.memory_space<any>>) dst(%19 : memref<1x256xf32, #tpu.memory_space<vmem>>)
    %c0_i32_12 = arith.constant 0 : i32
    %c0_i32_13 = arith.constant 0 : i32
    %22 = tpu.memref_slice %arg2[%c0_i32_12, %c0_i32_13] : memref<16x256xf32, #tpu.memory_space<any>> -> memref<1x256xf32, #tpu.memory_space<any>>
    %c1_i32_14 = arith.constant 1 : i32
    %c0_i32_15 = arith.constant 0 : i32
    %23 = tpu.memref_slice %arg5[%9, %c1_i32_14, %c0_i32_15] : memref<2x16x256xf32, #tpu.memory_space<vmem>> -> memref<1x1x256xf32, #tpu.memory_space<vmem>>
    %24 = tpu.memref_squeeze %23 : memref<1x1x256xf32, #tpu.memory_space<vmem>> -> memref<1x256xf32, #tpu.memory_space<vmem>>
    %25 = tpu.memref_slice %arg7[%9] : memref<2x!tpu.dma_semaphore, #tpu.memory_space<semaphore_mem>> -> memref<1x!tpu.dma_semaphore, #tpu.memory_space<semaphore_mem>>
    %26 = tpu.memref_squeeze %25 : memref<1x!tpu.dma_semaphore, #tpu.memory_space<semaphore_mem>> -> memref<!tpu.dma_semaphore, #tpu.memory_space<semaphore_mem>>
    tpu.wait_dma2 semaphore(%26 : memref<!tpu.dma_semaphore, #tpu.memory_space<semaphore_mem>>) src(%22 : memref<1x256xf32, #tpu.memory_space<any>>) dst(%24 : memref<1x256xf32, #tpu.memory_space<vmem>>)
    %c0_i32_16 = arith.constant 0 : i32
    %c0_i32_17 = arith.constant 0 : i32
    %27 = tpu.memref_slice %arg2[%c0_i32_16, %c0_i32_17] : memref<16x256xf32, #tpu.memory_space<any>> -> memref<1x256xf32, #tpu.memory_space<any>>
    %c2_i32_18 = arith.constant 2 : i32
    %c0_i32_19 = arith.constant 0 : i32
    %28 = tpu.memref_slice %arg5[%9, %c2_i32_18, %c0_i32_19] : memref<2x16x256xf32, #tpu.memory_space<vmem>> -> memref<1x1x256xf32, #tpu.memory_space<vmem>>
    %29 = tpu.memref_squeeze %28 : memref<1x1x256xf32, #tpu.memory_space<vmem>> -> memref<1x256xf32, #tpu.memory_space<vmem>>
    %30 = tpu.memref_slice %arg7[%9] : memref<2x!tpu.dma_semaphore, #tpu.memory_space<semaphore_mem>> -> memref<1x!tpu.dma_semaphore, #tpu.memory_space<semaphore_mem>>
    %31 = tpu.memref_squeeze %30 : memref<1x!tpu.dma_semaphore, #tpu.memory_space<semaphore_mem>> -> memref<!tpu.dma_semaphore, #tpu.memory_space<semaphore_mem>>
    tpu.wait_dma2 semaphore(%31 : memref<!tpu.dma_semaphore, #tpu.memory_space<semaphore_mem>>) src(%27 : memref<1x256xf32, #tpu.memory_space<any>>) dst(%29 : memref<1x256xf32, #tpu.memory_space<vmem>>)
    %c0_i32_20 = arith.constant 0 : i32
    %c0_i32_21 = arith.constant 0 : i32
    %32 = tpu.memref_slice %arg2[%c0_i32_20, %c0_i32_21] : memref<16x256xf32, #tpu.memory_space<any>> -> memref<1x256xf32, #tpu.memory_space<any>>
    %c3_i32 = arith.constant 3 : i32
    %c0_i32_22 = arith.constant 0 : i32
    %33 = tpu.memref_slice %arg5[%9, %c3_i32, %c0_i32_22] : memref<2x16x256xf32, #tpu.memory_space<vmem>> -> memref<1x1x256xf32, #tpu.memory_space<vmem>>
    %34 = tpu.memref_squeeze %33 : memref<1x1x256xf32, #tpu.memory_space<vmem>> -> memref<1x256xf32, #tpu.memory_space<vmem>>
    %35 = tpu.memref_slice %arg7[%9] : memref<2x!tpu.dma_semaphore, #tpu.memory_space<semaphore_mem>> -> memref<1x!tpu.dma_semaphore, #tpu.memory_space<semaphore_mem>>
    %36 = tpu.memref_squeeze %35 : memref<1x!tpu.dma_semaphore, #tpu.memory_space<semaphore_mem>> -> memref<!tpu.dma_semaphore, #tpu.memory_space<semaphore_mem>>
    tpu.wait_dma2 semaphore(%36 : memref<!tpu.dma_semaphore, #tpu.memory_space<semaphore_mem>>) src(%32 : memref<1x256xf32, #tpu.memory_space<any>>) dst(%34 : memref<1x256xf32, #tpu.memory_space<vmem>>)
    %c0_i32_23 = arith.constant 0 : i32
    %c0_i32_24 = arith.constant 0 : i32
    %37 = tpu.memref_slice %arg2[%c0_i32_23, %c0_i32_24] : memref<16x256xf32, #tpu.memory_space<any>> -> memref<1x256xf32, #tpu.memory_space<any>>
    %c4_i32 = arith.constant 4 : i32
    %c0_i32_25 = arith.constant 0 : i32
    %38 = tpu.memref_slice %arg5[%9, %c4_i32, %c0_i32_25] : memref<2x16x256xf32, #tpu.memory_space<vmem>> -> memref<1x1x256xf32, #tpu.memory_space<vmem>>
    %39 = tpu.memref_squeeze %38 : memref<1x1x256xf32, #tpu.memory_space<vmem>> -> memref<1x256xf32, #tpu.memory_space<vmem>>
    %40 = tpu.memref_slice %arg7[%9] : memref<2x!tpu.dma_semaphore, #tpu.memory_space<semaphore_mem>> -> memref<1x!tpu.dma_semaphore, #tpu.memory_space<semaphore_mem>>
    %41 = tpu.memref_squeeze %40 : memref<1x!tpu.dma_semaphore, #tpu.memory_space<semaphore_mem>> -> memref<!tpu.dma_semaphore, #tpu.memory_space<semaphore_mem>>
    tpu.wait_dma2 semaphore(%41 : memref<!tpu.dma_semaphore, #tpu.memory_space<semaphore_mem>>) src(%37 : memref<1x256xf32, #tpu.memory_space<any>>) dst(%39 : memref<1x256xf32, #tpu.memory_space<vmem>>)
    %c0_i32_26 = arith.constant 0 : i32
    %c0_i32_27 = arith.constant 0 : i32
    %42 = tpu.memref_slice %arg2[%c0_i32_26, %c0_i32_27] : memref<16x256xf32, #tpu.memory_space<any>> -> memref<1x256xf32, #tpu.memory_space<any>>
    %c5_i32 = arith.constant 5 : i32
    %c0_i32_28 = arith.constant 0 : i32
    %43 = tpu.memref_slice %arg5[%9, %c5_i32, %c0_i32_28] : memref<2x16x256xf32, #tpu.memory_space<vmem>> -> memref<1x1x256xf32, #tpu.memory_space<vmem>>
    %44 = tpu.memref_squeeze %43 : memref<1x1x256xf32, #tpu.memory_space<vmem>> -> memref<1x256xf32, #tpu.memory_space<vmem>>
    %45 = tpu.memref_slice %arg7[%9] : memref<2x!tpu.dma_semaphore, #tpu.memory_space<semaphore_mem>> -> memref<1x!tpu.dma_semaphore, #tpu.memory_space<semaphore_mem>>
    %46 = tpu.memref_squeeze %45 : memref<1x!tpu.dma_semaphore, #tpu.memory_space<semaphore_mem>> -> memref<!tpu.dma_semaphore, #tpu.memory_space<semaphore_mem>>
    tpu.wait_dma2 semaphore(%46 : memref<!tpu.dma_semaphore, #tpu.memory_space<semaphore_mem>>) src(%42 : memref<1x256xf32, #tpu.memory_space<any>>) dst(%44 : memref<1x256xf32, #tpu.memory_space<vmem>>)
    %c0_i32_29 = arith.constant 0 : i32
    %c0_i32_30 = arith.constant 0 : i32
    %47 = tpu.memref_slice %arg2[%c0_i32_29, %c0_i32_30] : memref<16x256xf32, #tpu.memory_space<any>> -> memref<1x256xf32, #tpu.memory_space<any>>
    %c6_i32 = arith.constant 6 : i32
    %c0_i32_31 = arith.constant 0 : i32
    %48 = tpu.memref_slice %arg5[%9, %c6_i32, %c0_i32_31] : memref<2x16x256xf32, #tpu.memory_space<vmem>> -> memref<1x1x256xf32, #tpu.memory_space<vmem>>
    %49 = tpu.memref_squeeze %48 : memref<1x1x256xf32, #tpu.memory_space<vmem>> -> memref<1x256xf32, #tpu.memory_space<vmem>>
    %50 = tpu.memref_slice %arg7[%9] : memref<2x!tpu.dma_semaphore, #tpu.memory_space<semaphore_mem>> -> memref<1x!tpu.dma_semaphore, #tpu.memory_space<semaphore_mem>>
    %51 = tpu.memref_squeeze %50 : memref<1x!tpu.dma_semaphore, #tpu.memory_space<semaphore_mem>> -> memref<!tpu.dma_semaphore, #tpu.memory_space<semaphore_mem>>
    tpu.wait_dma2 semaphore(%51 : memref<!tpu.dma_semaphore, #tpu.memory_space<semaphore_mem>>) src(%47 : memref<1x256xf32, #tpu.memory_space<any>>) dst(%49 : memref<1x256xf32, #tpu.memory_space<vmem>>)
    %c0_i32_32 = arith.constant 0 : i32
    %c0_i32_33 = arith.constant 0 : i32
    %52 = tpu.memref_slice %arg2[%c0_i32_32, %c0_i32_33] : memref<16x256xf32, #tpu.memory_space<any>> -> memref<1x256xf32, #tpu.memory_space<any>>
    %c7_i32 = arith.constant 7 : i32
    %c0_i32_34 = arith.constant 0 : i32
    %53 = tpu.memref_slice %arg5[%9, %c7_i32, %c0_i32_34] : memref<2x16x256xf32, #tpu.memory_space<vmem>> -> memref<1x1x256xf32, #tpu.memory_space<vmem>>
    %54 = tpu.memref_squeeze %53 : memref<1x1x256xf32, #tpu.memory_space<vmem>> -> memref<1x256xf32, #tpu.memory_space<vmem>>
    %55 = tpu.memref_slice %arg7[%9] : memref<2x!tpu.dma_semaphore, #tpu.memory_space<semaphore_mem>> -> memref<1x!tpu.dma_semaphore, #tpu.memory_space<semaphore_mem>>
    %56 = tpu.memref_squeeze %55 : memref<1x!tpu.dma_semaphore, #tpu.memory_space<semaphore_mem>> -> memref<!tpu.dma_semaphore, #tpu.memory_space<semaphore_mem>>
    tpu.wait_dma2 semaphore(%56 : memref<!tpu.dma_semaphore, #tpu.memory_space<semaphore_mem>>) src(%52 : memref<1x256xf32, #tpu.memory_space<any>>) dst(%54 : memref<1x256xf32, #tpu.memory_space<vmem>>)
    %c0_i32_35 = arith.constant 0 : i32
    %c0_i32_36 = arith.constant 0 : i32
    %57 = tpu.memref_slice %arg2[%c0_i32_35, %c0_i32_36] : memref<16x256xf32, #tpu.memory_space<any>> -> memref<1x256xf32, #tpu.memory_space<any>>
    %c8_i32 = arith.constant 8 : i32
    %c0_i32_37 = arith.constant 0 : i32
    %58 = tpu.memref_slice %arg5[%9, %c8_i32, %c0_i32_37] : memref<2x16x256xf32, #tpu.memory_space<vmem>> -> memref<1x1x256xf32, #tpu.memory_space<vmem>>
    %59 = tpu.memref_squeeze %58 : memref<1x1x256xf32, #tpu.memory_space<vmem>> -> memref<1x256xf32, #tpu.memory_space<vmem>>
    %60 = tpu.memref_slice %arg7[%9] : memref<2x!tpu.dma_semaphore, #tpu.memory_space<semaphore_mem>> -> memref<1x!tpu.dma_semaphore, #tpu.memory_space<semaphore_mem>>
    %61 = tpu.memref_squeeze %60 : memref<1x!tpu.dma_semaphore, #tpu.memory_space<semaphore_mem>> -> memref<!tpu.dma_semaphore, #tpu.memory_space<semaphore_mem>>
    tpu.wait_dma2 semaphore(%61 : memref<!tpu.dma_semaphore, #tpu.memory_space<semaphore_mem>>) src(%57 : memref<1x256xf32, #tpu.memory_space<any>>) dst(%59 : memref<1x256xf32, #tpu.memory_space<vmem>>)
    %c0_i32_38 = arith.constant 0 : i32
    %c0_i32_39 = arith.constant 0 : i32
    %62 = tpu.memref_slice %arg2[%c0_i32_38, %c0_i32_39] : memref<16x256xf32, #tpu.memory_space<any>> -> memref<1x256xf32, #tpu.memory_space<any>>
    %c9_i32 = arith.constant 9 : i32
    %c0_i32_40 = arith.constant 0 : i32
    %63 = tpu.memref_slice %arg5[%9, %c9_i32, %c0_i32_40] : memref<2x16x256xf32, #tpu.memory_space<vmem>> -> memref<1x1x256xf32, #tpu.memory_space<vmem>>
    %64 = tpu.memref_squeeze %63 : memref<1x1x256xf32, #tpu.memory_space<vmem>> -> memref<1x256xf32, #tpu.memory_space<vmem>>
    %65 = tpu.memref_slice %arg7[%9] : memref<2x!tpu.dma_semaphore, #tpu.memory_space<semaphore_mem>> -> memref<1x!tpu.dma_semaphore, #tpu.memory_space<semaphore_mem>>
    %66 = tpu.memref_squeeze %65 : memref<1x!tpu.dma_semaphore, #tpu.memory_space<semaphore_mem>> -> memref<!tpu.dma_semaphore, #tpu.memory_space<semaphore_mem>>
    tpu.wait_dma2 semaphore(%66 : memref<!tpu.dma_semaphore, #tpu.memory_space<semaphore_mem>>) src(%62 : memref<1x256xf32, #tpu.memory_space<any>>) dst(%64 : memref<1x256xf32, #tpu.memory_space<vmem>>)
    %c0_i32_41 = arith.constant 0 : i32
    %c0_i32_42 = arith.constant 0 : i32
    %67 = tpu.memref_slice %arg2[%c0_i32_41, %c0_i32_42] : memref<16x256xf32, #tpu.memory_space<any>> -> memref<1x256xf32, #tpu.memory_space<any>>
    %c10_i32 = arith.constant 10 : i32
    %c0_i32_43 = arith.constant 0 : i32
    %68 = tpu.memref_slice %arg5[%9, %c10_i32, %c0_i32_43] : memref<2x16x256xf32, #tpu.memory_space<vmem>> -> memref<1x1x256xf32, #tpu.memory_space<vmem>>
    %69 = tpu.memref_squeeze %68 : memref<1x1x256xf32, #tpu.memory_space<vmem>> -> memref<1x256xf32, #tpu.memory_space<vmem>>
    %70 = tpu.memref_slice %arg7[%9] : memref<2x!tpu.dma_semaphore, #tpu.memory_space<semaphore_mem>> -> memref<1x!tpu.dma_semaphore, #tpu.memory_space<semaphore_mem>>
    %71 = tpu.memref_squeeze %70 : memref<1x!tpu.dma_semaphore, #tpu.memory_space<semaphore_mem>> -> memref<!tpu.dma_semaphore, #tpu.memory_space<semaphore_mem>>
    tpu.wait_dma2 semaphore(%71 : memref<!tpu.dma_semaphore, #tpu.memory_space<semaphore_mem>>) src(%67 : memref<1x256xf32, #tpu.memory_space<any>>) dst(%69 : memref<1x256xf32, #tpu.memory_space<vmem>>)
    %c0_i32_44 = arith.constant 0 : i32
    %c0_i32_45 = arith.constant 0 : i32
    %72 = tpu.memref_slice %arg2[%c0_i32_44, %c0_i32_45] : memref<16x256xf32, #tpu.memory_space<any>> -> memref<1x256xf32, #tpu.memory_space<any>>
    %c11_i32 = arith.constant 11 : i32
    %c0_i32_46 = arith.constant 0 : i32
    %73 = tpu.memref_slice %arg5[%9, %c11_i32, %c0_i32_46] : memref<2x16x256xf32, #tpu.memory_space<vmem>> -> memref<1x1x256xf32, #tpu.memory_space<vmem>>
    %74 = tpu.memref_squeeze %73 : memref<1x1x256xf32, #tpu.memory_space<vmem>> -> memref<1x256xf32, #tpu.memory_space<vmem>>
    %75 = tpu.memref_slice %arg7[%9] : memref<2x!tpu.dma_semaphore, #tpu.memory_space<semaphore_mem>> -> memref<1x!tpu.dma_semaphore, #tpu.memory_space<semaphore_mem>>
    %76 = tpu.memref_squeeze %75 : memref<1x!tpu.dma_semaphore, #tpu.memory_space<semaphore_mem>> -> memref<!tpu.dma_semaphore, #tpu.memory_space<semaphore_mem>>
    tpu.wait_dma2 semaphore(%76 : memref<!tpu.dma_semaphore, #tpu.memory_space<semaphore_mem>>) src(%72 : memref<1x256xf32, #tpu.memory_space<any>>) dst(%74 : memref<1x256xf32, #tpu.memory_space<vmem>>)
    %c0_i32_47 = arith.constant 0 : i32
    %c0_i32_48 = arith.constant 0 : i32
    %77 = tpu.memref_slice %arg2[%c0_i32_47, %c0_i32_48] : memref<16x256xf32, #tpu.memory_space<any>> -> memref<1x256xf32, #tpu.memory_space<any>>
    %c12_i32 = arith.constant 12 : i32
    %c0_i32_49 = arith.constant 0 : i32
    %78 = tpu.memref_slice %arg5[%9, %c12_i32, %c0_i32_49] : memref<2x16x256xf32, #tpu.memory_space<vmem>> -> memref<1x1x256xf32, #tpu.memory_space<vmem>>
    %79 = tpu.memref_squeeze %78 : memref<1x1x256xf32, #tpu.memory_space<vmem>> -> memref<1x256xf32, #tpu.memory_space<vmem>>
    %80 = tpu.memref_slice %arg7[%9] : memref<2x!tpu.dma_semaphore, #tpu.memory_space<semaphore_mem>> -> memref<1x!tpu.dma_semaphore, #tpu.memory_space<semaphore_mem>>
    %81 = tpu.memref_squeeze %80 : memref<1x!tpu.dma_semaphore, #tpu.memory_space<semaphore_mem>> -> memref<!tpu.dma_semaphore, #tpu.memory_space<semaphore_mem>>
    tpu.wait_dma2 semaphore(%81 : memref<!tpu.dma_semaphore, #tpu.memory_space<semaphore_mem>>) src(%77 : memref<1x256xf32, #tpu.memory_space<any>>) dst(%79 : memref<1x256xf32, #tpu.memory_space<vmem>>)
    %c0_i32_50 = arith.constant 0 : i32
    %c0_i32_51 = arith.constant 0 : i32
    %82 = tpu.memref_slice %arg2[%c0_i32_50, %c0_i32_51] : memref<16x256xf32, #tpu.memory_space<any>> -> memref<1x256xf32, #tpu.memory_space<any>>
    %c13_i32 = arith.constant 13 : i32
    %c0_i32_52 = arith.constant 0 : i32
    %83 = tpu.memref_slice %arg5[%9, %c13_i32, %c0_i32_52] : memref<2x16x256xf32, #tpu.memory_space<vmem>> -> memref<1x1x256xf32, #tpu.memory_space<vmem>>
    %84 = tpu.memref_squeeze %83 : memref<1x1x256xf32, #tpu.memory_space<vmem>> -> memref<1x256xf32, #tpu.memory_space<vmem>>
    %85 = tpu.memref_slice %arg7[%9] : memref<2x!tpu.dma_semaphore, #tpu.memory_space<semaphore_mem>> -> memref<1x!tpu.dma_semaphore, #tpu.memory_space<semaphore_mem>>
    %86 = tpu.memref_squeeze %85 : memref<1x!tpu.dma_semaphore, #tpu.memory_space<semaphore_mem>> -> memref<!tpu.dma_semaphore, #tpu.memory_space<semaphore_mem>>
    tpu.wait_dma2 semaphore(%86 : memref<!tpu.dma_semaphore, #tpu.memory_space<semaphore_mem>>) src(%82 : memref<1x256xf32, #tpu.memory_space<any>>) dst(%84 : memref<1x256xf32, #tpu.memory_space<vmem>>)
    %c0_i32_53 = arith.constant 0 : i32
    %c0_i32_54 = arith.constant 0 : i32
    %87 = tpu.memref_slice %arg2[%c0_i32_53, %c0_i32_54] : memref<16x256xf32, #tpu.memory_space<any>> -> memref<1x256xf32, #tpu.memory_space<any>>
    %c14_i32 = arith.constant 14 : i32
    %c0_i32_55 = arith.constant 0 : i32
    %88 = tpu.memref_slice %arg5[%9, %c14_i32, %c0_i32_55] : memref<2x16x256xf32, #tpu.memory_space<vmem>> -> memref<1x1x256xf32, #tpu.memory_space<vmem>>
    %89 = tpu.memref_squeeze %88 : memref<1x1x256xf32, #tpu.memory_space<vmem>> -> memref<1x256xf32, #tpu.memory_space<vmem>>
    %90 = tpu.memref_slice %arg7[%9] : memref<2x!tpu.dma_semaphore, #tpu.memory_space<semaphore_mem>> -> memref<1x!tpu.dma_semaphore, #tpu.memory_space<semaphore_mem>>
    %91 = tpu.memref_squeeze %90 : memref<1x!tpu.dma_semaphore, #tpu.memory_space<semaphore_mem>> -> memref<!tpu.dma_semaphore, #tpu.memory_space<semaphore_mem>>
    tpu.wait_dma2 semaphore(%91 : memref<!tpu.dma_semaphore, #tpu.memory_space<semaphore_mem>>) src(%87 : memref<1x256xf32, #tpu.memory_space<any>>) dst(%89 : memref<1x256xf32, #tpu.memory_space<vmem>>)
    %c0_i32_56 = arith.constant 0 : i32
    %c0_i32_57 = arith.constant 0 : i32
    %92 = tpu.memref_slice %arg2[%c0_i32_56, %c0_i32_57] : memref<16x256xf32, #tpu.memory_space<any>> -> memref<1x256xf32, #tpu.memory_space<any>>
    %c15_i32 = arith.constant 15 : i32
    %c0_i32_58 = arith.constant 0 : i32
    %93 = tpu.memref_slice %arg5[%9, %c15_i32, %c0_i32_58] : memref<2x16x256xf32, #tpu.memory_space<vmem>> -> memref<1x1x256xf32, #tpu.memory_space<vmem>>
    %94 = tpu.memref_squeeze %93 : memref<1x1x256xf32, #tpu.memory_space<vmem>> -> memref<1x256xf32, #tpu.memory_space<vmem>>
    %95 = tpu.memref_slice %arg7[%9] : memref<2x!tpu.dma_semaphore, #tpu.memory_space<semaphore_mem>> -> memref<1x!tpu.dma_semaphore, #tpu.memory_space<semaphore_mem>>
    %96 = tpu.memref_squeeze %95 : memref<1x!tpu.dma_semaphore, #tpu.memory_space<semaphore_mem>> -> memref<!tpu.dma_semaphore, #tpu.memory_space<semaphore_mem>>
    tpu.wait_dma2 semaphore(%96 : memref<!tpu.dma_semaphore, #tpu.memory_space<semaphore_mem>>) src(%92 : memref<1x256xf32, #tpu.memory_space<any>>) dst(%94 : memref<1x256xf32, #tpu.memory_space<vmem>>)
    %97 = arith.index_cast %9 : i32 to index
    %c0 = arith.constant 0 : index
    %c0_59 = arith.constant 0 : index
    %98 = vector.load %arg5[%97, %c0, %c0_59] : memref<2x16x256xf32, #tpu.memory_space<vmem>>, vector<1x16x256xf32>
    %99 = vector.shape_cast %98 : vector<1x16x256xf32> to vector<16x256xf32>
    %c0_60 = arith.constant 0 : index
    %c0_61 = arith.constant 0 : index
    %100 = vector.load %arg3[%c0_60, %c0_61] : memref<16x256xf32, #tpu.memory_space<vmem>>, vector<16x256xf32>
    %c0_62 = arith.constant 0 : index
    %c0_63 = arith.constant 0 : index
    %101 = vector.load %arg6[%c0_62, %c0_63] : memref<16x256xf32, #tpu.memory_space<vmem>>, vector<16x256xf32>
    %cst = arith.constant 0.000000e+00 : f32
    %102 = vector.broadcast %cst : f32 to vector<16x256xf32>
    %103 = arith.maximumf %99, %102 : vector<16x256xf32>
    %104 = arith.mulf %99, %100 : vector<16x256xf32>
    %105 = arith.subf %103, %104 : vector<16x256xf32>
    %106 = math.absf %99 : vector<16x256xf32>
    %cst_64 = arith.constant 0.000000e+00 : f32
    %107 = vector.broadcast %cst_64 : f32 to vector<16x256xf32>
    %108 = arith.subf %107, %106 : vector<16x256xf32>
    %109 = math.exp %108 : vector<16x256xf32>
    %110 = math.log1p %109 : vector<16x256xf32>
    %111 = arith.addf %105, %110 : vector<16x256xf32>
    %c16_i32 = arith.constant 16 : i32
    %112 = arith.muli %arg0, %c16_i32 : i32
    %113 = tpu.iota {dimensions = array<i32: 0>} : vector<16x256xi32>
    %114 = vector.broadcast %112 : i32 to vector<16x256xi32>
    %115 = arith.addi %114, %113 : vector<16x256xi32>
    %c4_i32_65 = arith.constant 4 : i32
    %116 = vector.broadcast %c4_i32_65 : i32 to vector<16x256xi32>
    %117 = arith.cmpi slt, %115, %116 : vector<16x256xi32>
    %cst_66 = arith.constant 0.000000e+00 : f32
    %118 = vector.broadcast %cst_66 : f32 to vector<16x256xf32>
    %119 = arith.select %117, %111, %118 : vector<16x256xi1>, vector<16x256xf32>
    %120 = arith.addf %101, %119 : vector<16x256xf32>
    %c0_67 = arith.constant 0 : index
    %c0_68 = arith.constant 0 : index
    %121 = vector.load %arg6[%c0_67, %c0_68] : memref<16x256xf32, #tpu.memory_space<vmem>>, vector<16x256xf32>
    tpu.vector_store %arg6[%c0_67, %c0_68], %120 {strides = array<i32>} : memref<16x256xf32, #tpu.memory_space<vmem>>, vector<16x256xf32>,
    %c0_i32_69 = arith.constant 0 : i32
    %122 = arith.cmpi eq, %arg0, %c0_i32_69 : i32
    %123 = arith.extui %122 : i1 to i32
    %c0_i32_70 = arith.constant 0 : i32
    %124 = arith.cmpi ne, %123, %c0_i32_70 : i32
    scf.if %124 {
      %c0_71 = arith.constant 0 : index
      %c0_72 = arith.constant 0 : index
      %125 = vector.load %arg6[%c0_71, %c0_72] : memref<16x256xf32, #tpu.memory_space<vmem>>, vector<16x256xf32>
      %126 = vector.shape_cast %125 : vector<16x256xf32> to vector<1x16x256xf32>
      %cst_73 = arith.constant dense<0.000000e+00> : vector<1xf32>
      %127 = vector.multi_reduction <add>, %126, %cst_73 [1, 2] : vector<1x16x256xf32> to vector<1xf32>
      %128 = vector.shape_cast %127 : vector<1xf32> to vector<1x1x1xf32>
      %129 = vector.extract %128[0, 0, 0] : f32 from vector<1x1x1xf32>
      %130 = vector.broadcast %129 : f32 to vector<1x1xf32>
      %cst_74 = arith.constant 9.765625E-4 : f32
      %131 = vector.broadcast %cst_74 : f32 to vector<1x1xf32>
      %132 = arith.mulf %130, %131 : vector<1x1xf32>
      %c0_75 = arith.constant 0 : index
      %c0_76 = arith.constant 0 : index
      %133 = vector.load %arg4[%c0_75, %c0_76] : memref<1x1xf32, #tpu.memory_space<vmem>>, vector<1x1xf32>
      tpu.vector_store %arg4[%c0_75, %c0_76], %132 {strides = array<i32>} : memref<1x1xf32, #tpu.memory_space<vmem>>, vector<1x1xf32>,
    } else {
    }
    return
  }
  func.func @transform_1(%arg0: i32, %arg1: memref<32xi32, #tpu.memory_space<smem>>) -> (i32, i32) {
    %c0_i32 = arith.constant 0 : i32
    %c0_i32_0 = arith.constant 0 : i32
    return %arg0, %c0_i32 : i32, i32
  }
  func.func @transform_2(%arg0: i32, %arg1: memref<32xi32, #tpu.memory_space<smem>>) -> (i32, i32) {
    %c0_i32 = arith.constant 0 : i32
    %c0_i32_0 = arith.constant 0 : i32
    %c0_i32_1 = arith.constant 0 : i32
    return %c0_i32, %c0_i32_0 : i32, i32
  }
}

</mosaic_0001>

<llo_original>
// kernel: tpu_custom_call.1
$region0: #{tpu_custom_call.1}
  #allocation0 [shape = 'u32[]', space=smem, size = 0x4, offset = 0x4, fixed_abs, tag = 'smem constant byte address 0x4 - core index']
  #allocation1 [shape = 'u32[144,128]{1,0:T(1,128)}', space=vmem, size = 0x12000, scoped, tag = 'internal scratch']
  #allocation2 [shape = 'f32[2,16,256]{2,1,0:T(8,128)}', space=vmem, size = 0x8000, scoped, tag = 'scratch operand']
  #allocation3 [shape = 'f32[16,256]{1,0:T(8,128)}', space=vmem, size = 0x4000, scoped, tag = 'scratch operand']
  #allocation4 [shape = 's32[2]{0}', space=sflag, size = 0x8, scoped, tag = 'scratch operand']
  #allocation5 [shape = 's32[1]{0}', space=sflag, size = 0x4, scoped, tag = 'scoped memory for tpu_custom_call.1']
  #allocation6 [shape = 'u8[512]{0}', space=smem, size = 0x200, scoped, tag = 'prefetched SMEM operand 0']
  #allocation11 [shape = 's32[]', space=sflag, size = 0x4, offset = 0, fixed_abs, tag = 'sflag constant byte address 0x0 - dummy sync flag']
  #allocation12 [shape = 's32[]', space=sflag, size = 0x4, offset = 0, fixed_abs, tag = 'sflag constant byte address 0x0 - dummy sync flag']
  #allocation13 [shape = 's32[]', space=sflag, size = 0x4, offset = 0, fixed_abs, tag = 'sflag constant byte address 0x0 - dummy sync flag']
  #allocation14 [shape = 's32[]', space=sflag, size = 0x4, offset = 0, fixed_abs, tag = 'sflag constant byte address 0x0 - dummy sync flag']
  #allocation15 [shape = 's32[]', space=sflag, size = 0x4, offset = 0, fixed_abs, tag = 'sflag constant byte address 0x0 - dummy sync flag']
  #allocation16 [shape = 's32[]', space=sflag, size = 0x4, offset = 0, fixed_abs, tag = 'sflag constant byte address 0x0 - dummy sync flag']
  #allocation17 [shape = 's32[]', space=sflag, size = 0x4, offset = 0, fixed_abs, tag = 'sflag constant byte address 0x0 - dummy sync flag']
  #allocation18 [shape = 's32[]', space=sflag, size = 0x4, offset = 0, fixed_abs, tag = 'sflag constant byte address 0x0 - dummy sync flag']
  #allocation19 [shape = 's32[]', space=sflag, size = 0x4, offset = 0, fixed_abs, tag = 'sflag constant byte address 0x0 - dummy sync flag']
  #allocation20 [shape = 's32[]', space=sflag, size = 0x4, offset = 0, fixed_abs, tag = 'sflag constant byte address 0x0 - dummy sync flag']
  #allocation21 [shape = 's32[]', space=sflag, size = 0x4, offset = 0, fixed_abs, tag = 'sflag constant byte address 0x0 - dummy sync flag']
  #allocation22 [shape = 's32[]', space=sflag, size = 0x4, offset = 0, fixed_abs, tag = 'sflag constant byte address 0x0 - dummy sync flag']
  #allocation23 [shape = 's32[]', space=sflag, size = 0x4, offset = 0, fixed_abs, tag = 'sflag constant byte address 0x0 - dummy sync flag']
  #allocation24 [shape = 's32[]', space=sflag, size = 0x4, offset = 0, fixed_abs, tag = 'sflag constant byte address 0x0 - dummy sync flag']
  #allocation25 [shape = 's32[]', space=sflag, size = 0x4, offset = 0, fixed_abs, tag = 'sflag constant byte address 0x0 - dummy sync flag']
  #allocation26 [shape = 's32[]', space=sflag, size = 0x4, offset = 0, fixed_abs, tag = 'sflag constant byte address 0x0 - dummy sync flag']
  #allocation27 [shape = 's32[]', space=sflag, size = 0x4, offset = 0, fixed_abs, tag = 'sflag constant byte address 0x0 - dummy sync flag']
  #allocation28 [shape = 's32[]', space=sflag, size = 0x4, offset = 0, fixed_abs, tag = 'sflag constant byte address 0x0 - dummy sync flag']
  #allocation29 [shape = 's32[]', space=sflag, size = 0x4, offset = 0, fixed_abs, tag = 'sflag constant byte address 0x0 - dummy sync flag']
  #allocation30 [shape = 's32[]', space=sflag, size = 0x4, offset = 0, fixed_abs, tag = 'sflag constant byte address 0x0 - dummy sync flag']
  #allocation31 [shape = 's32[]', space=sflag, size = 0x4, offset = 0, fixed_abs, tag = 'sflag constant byte address 0x0 - dummy sync flag']
  #allocation32 [shape = 's32[]', space=sflag, size = 0x4, offset = 0, fixed_abs, tag = 'sflag constant byte address 0x0 - dummy sync flag']
  #allocation33 [shape = 's32[]', space=sflag, size = 0x4, offset = 0, fixed_abs, tag = 'sflag constant byte address 0x0 - dummy sync flag']
  #allocation34 [shape = 's32[]', space=sflag, size = 0x4, offset = 0, fixed_abs, tag = 'sflag constant byte address 0x0 - dummy sync flag']
  #allocation35 [shape = 's32[]', space=sflag, size = 0x4, offset = 0, fixed_abs, tag = 'sflag constant byte address 0x0 - dummy sync flag']
  #allocation36 [shape = 's32[]', space=sflag, size = 0x4, offset = 0, fixed_abs, tag = 'sflag constant byte address 0x0 - dummy sync flag']
  #allocation37 [shape = 's32[]', space=sflag, size = 0x4, offset = 0, fixed_abs, tag = 'sflag constant byte address 0x0 - dummy sync flag']
  #allocation38 [shape = 's32[]', space=sflag, size = 0x4, offset = 0, fixed_abs, tag = 'sflag constant byte address 0x0 - dummy sync flag']
  #allocation39 [shape = 's32[]', space=sflag, size = 0x4, offset = 0, fixed_abs, tag = 'sflag constant byte address 0x0 - dummy sync flag']
  #allocation40 [shape = 's32[]', space=sflag, size = 0x4, offset = 0, fixed_abs, tag = 'sflag constant byte address 0x0 - dummy sync flag']
  #allocation41 [shape = 's32[]', space=sflag, size = 0x4, offset = 0, fixed_abs, tag = 'sflag constant byte address 0x0 - dummy sync flag']
  #allocation42 [shape = 's32[]', space=sflag, size = 0x4, offset = 0, fixed_abs, tag = 'sflag constant byte address 0x0 - dummy sync flag']
  %s0 = inlined_call_operand.hbm [shape: s32[32], index: 0, kind: input, shape index: {}]
  %s1 = inlined_call_operand.hbm [shape: f32[16,256], index: 1, kind: input, shape index: {}]
  %s2 = inlined_call_operand.hbm [shape: f32[16,256], index: 2, kind: input, shape index: {}]
  %s3 = inlined_call_operand.hbm [shape: f32[1,1], index: 3, kind: output, shape index: {}]
  %s4 = sld [smem:[#allocation0]]
  $region30: #{tpu_custom_call.1} parent=0
    _
  %s6 = ssub.s32 1, %s4
  %s7 = scalar_select 0, %s6, %s4
  %9 = dma.hbm_to_smem %s0, 16, [#allocation6], [#allocation5]
  %10 = dma.done [#allocation5], 16
  %11 = sfence
  $region1: #{tpu_custom_call.1} parent=0
    #allocation7 [shape = 'u8[16384]{0}', space=vmem, size = 0x4000, scoped, tag = 'input window, operand 2, single buffered']
    #allocation8 [shape = 's32[1]{0}', space=sflag, size = 0x4, scoped, tag = 'scoped memory for tpu_custom_call.1']
    #allocation9 [shape = 's32[1]{0}', space=sflag, size = 0x4, scoped, tag = 'scoped memory for tpu_custom_call.1']
    #allocation10 [shape = 'u8[512]{0}', space=vmem, size = 0x400, scoped, tag = 'output window, operand 0, single buffered']
    %12 = vsyncpa [#allocation8], 0
    %13 = vsyncpa [#allocation9], 0
    // Predicated region
    $region2: #{tpu_custom_call.1} parent=1 // pred_check
      _
    $region3: #{tpu_custom_call.1} parent=1 // pred_check_branch
      %15 = sbr.rel (0) target = $region5
    $region4: #{tpu_custom_call.1} parent=1 // pred_region
      %s17 = ssub.s32 512, 512
      %18 = vsyncadd [#allocation8], %s17
      %s19 = sshll.u32 [#allocation7], 4
      %s20 = int_to_ptr.vmem [resolvable:$true] %s19
      %25 = dma.hbm_to_vmem [thread:$0]  %s2, 512, %s20, [#allocation8], 256, 256, 16
    $region5: #{tpu_custom_call.1} parent=1 // pred_fallthru
      _
    // Predicated region
    $region6: #{tpu_custom_call.1} parent=1 // pred_check
      _
    $region7: #{tpu_custom_call.1} parent=1 // pred_check_branch
      %27 = sbr.rel (0) target = $region9
    $region8: #{tpu_custom_call.1} parent=1 // pred_region
      %28 = dma.done [#allocation8], 512
    $region9: #{tpu_custom_call.1} parent=1 // pred_fallthru
      _
    %s29 = ssub.s32 0, 0
    %s30 = ssub.s32 0, 0
    %p31 = scmp.ne.s32.totalorder 0, 0
    %p32 = scmp.lt.s32.totalorder 0, 0
    %p33 = pnand %p32, %p31
    %p34 = pneg %p33
    %s35 = sadd.s32 0, 2
    %s36 = scalar_select %p34, %s35, 0
    %p37 = scmp.eq.s32.totalorder 0, 0
    // Predicated region
    $region10: #{tpu_custom_call.1} parent=1 // pred_check
      %p38 = pneg %p37
    $region11: #{tpu_custom_call.1} parent=1 // pred_check_branch
      %40 = sbr.rel (%p38) target = $region13
    $region12: #{tpu_custom_call.1} parent=1 // pred_region
      %41 = vst [vmem:[#allocation3] sm:$0xff] 0.0
      %42 = vst [vmem:[#allocation3 + $0x8] sm:$0xff] 0.0
      %43 = vst [vmem:[#allocation3 + $0x10] sm:$0xff] 0.0
      %44 = vst [vmem:[#allocation3 + $0x18] sm:$0xff] 0.0
      %s45 = sld [smem:[#allocation6]]
      %s46 = sshrl.u32 %s45, 3
      %s47 = sand.u32 %s45, 7
      %s48 = smul.u32 %s46, 16
      %s49 = sadd.s32 %s47, %s48
      %s50 = smul.addr %s49, 16
      %s51 = scalar_lea.hbm %s1, %s50
      %s53 = sshll.u32 [#allocation2], 4
      %s54 = int_to_ptr.vmem [resolvable:$true] %s53
      %56 = dma.hbm_to_vmem [thread:$0]  %s51, 32, %s54, [#allocation4], 128, 128, 1
      %s57 = sld [smem:[#allocation6 + $0x1]]
      %s58 = sshrl.u32 %s57, 3
      %s59 = sand.u32 %s57, 7
      %s60 = smul.u32 %s58, 16
      %s61 = sadd.s32 %s59, %s60
      %s62 = smul.addr %s61, 16
      %s63 = scalar_lea.hbm %s1, %s62
      %s64 = scalar_lea.vmem [#allocation2], 1
      %s66 = sshll.u32 %s64, 4
      %s67 = int_to_ptr.vmem [resolvable:$true] %s66
      %69 = dma.hbm_to_vmem [thread:$0]  %s63, 32, %s67, [#allocation4], 128, 128, 1
      %s70 = sld [smem:[#allocation6 + $0x2]]
      %s71 = sshrl.u32 %s70, 3
      %s72 = sand.u32 %s70, 7
      %s73 = smul.u32 %s71, 16
      %s74 = sadd.s32 %s72, %s73
      %s75 = smul.addr %s74, 16
      %s76 = scalar_lea.hbm %s1, %s75
      %s77 = scalar_lea.vmem [#allocation2], 2
      %s79 = sshll.u32 %s77, 4
      %s80 = int_to_ptr.vmem [resolvable:$true] %s79
      %82 = dma.hbm_to_vmem [thread:$0]  %s76, 32, %s80, [#allocation4], 128, 128, 1
      %s83 = sld [smem:[#allocation6 + $0x3]]
      %s84 = sshrl.u32 %s83, 3
      %s85 = sand.u32 %s83, 7
      %s86 = smul.u32 %s84, 16
      %s87 = sadd.s32 %s85, %s86
      %s88 = smul.addr %s87, 16
      %s89 = scalar_lea.hbm %s1, %s88
      %s90 = scalar_lea.vmem [#allocation2], 3
      %s92 = sshll.u32 %s90, 4
      %s93 = int_to_ptr.vmem [resolvable:$true] %s92
      %95 = dma.hbm_to_vmem [thread:$0]  %s89, 32, %s93, [#allocation4], 128, 128, 1
      %s96 = sld [smem:[#allocation6 + $0x4]]
      %s97 = sshrl.u32 %s96, 3
      %s98 = sand.u32 %s96, 7
      %s99 = smul.u32 %s97, 16
      %s100 = sadd.s32 %s98, %s99
      %s101 = smul.addr %s100, 16
      %s102 = scalar_lea.hbm %s1, %s101
      %s103 = scalar_lea.vmem [#allocation2], 4
      %s105 = sshll.u32 %s103, 4
      %s106 = int_to_ptr.vmem [resolvable:$true] %s105
      %108 = dma.hbm_to_vmem [thread:$0]  %s102, 32, %s106, [#allocation4], 128, 128, 1
      %s109 = sld [smem:[#allocation6 + $0x5]]
      %s110 = sshrl.u32 %s109, 3
      %s111 = sand.u32 %s109, 7
      %s112 = smul.u32 %s110, 16
      %s113 = sadd.s32 %s111, %s112
      %s114 = smul.addr %s113, 16
      %s115 = scalar_lea.hbm %s1, %s114
      %s116 = scalar_lea.vmem [#allocation2], 5
      %s118 = sshll.u32 %s116, 4
      %s119 = int_to_ptr.vmem [resolvable:$true] %s118
      %121 = dma.hbm_to_vmem [thread:$0]  %s115, 32, %s119, [#allocation4], 128, 128, 1
      %s122 = sld [smem:[#allocation6 + $0x6]]
      %s123 = sshrl.u32 %s122, 3
      %s124 = sand.u32 %s122, 7
      %s125 = smul.u32 %s123, 16
      %s126 = sadd.s32 %s124, %s125
      %s127 = smul.addr %s126, 16
      %s128 = scalar_lea.hbm %s1, %s127
      %s129 = scalar_lea.vmem [#allocation2], 6
      %s131 = sshll.u32 %s129, 4
      %s132 = int_to_ptr.vmem [resolvable:$true] %s131
      %134 = dma.hbm_to_vmem [thread:$0]  %s128, 32, %s132, [#allocation4], 128, 128, 1
      %s135 = sld [smem:[#allocation6 + $0x7]]
      %s136 = sshrl.u32 %s135, 3
      %s137 = sand.u32 %s135, 7
      %s138 = smul.u32 %s136, 16
      %s139 = sadd.s32 %s137, %s138
      %s140 = smul.addr %s139, 16
      %s141 = scalar_lea.hbm %s1, %s140
      %s142 = scalar_lea.vmem [#allocation2], 7
      %s144 = sshll.u32 %s142, 4
      %s145 = int_to_ptr.vmem [resolvable:$true] %s144
      %147 = dma.hbm_to_vmem [thread:$0]  %s141, 32, %s145, [#allocation4], 128, 128, 1
      %s148 = sld [smem:[#allocation6 + $0x8]]
      %s149 = sshrl.u32 %s148, 3
      %s150 = sand.u32 %s148, 7
      %s151 = smul.u32 %s149, 16
      %s152 = sadd.s32 %s150, %s151
      %s153 = smul.addr %s152, 16
      %s154 = scalar_lea.hbm %s1, %s153
      %s155 = scalar_lea.vmem [#allocation2], 16
      %s157 = sshll.u32 %s155, 4
      %s158 = int_to_ptr.vmem [resolvable:$true] %s157
      %160 = dma.hbm_to_vmem [thread:$0]  %s154, 32, %s158, [#allocation4], 128, 128, 1
      %s161 = sld [smem:[#allocation6 + $0x9]]
      %s162 = sshrl.u32 %s161, 3
      %s163 = sand.u32 %s161, 7
      %s164 = smul.u32 %s162, 16
      %s165 = sadd.s32 %s163, %s164
      %s166 = smul.addr %s165, 16
      %s167 = scalar_lea.hbm %s1, %s166
      %s168 = scalar_lea.vmem [#allocation2], 17
      %s170 = sshll.u32 %s168, 4
      %s171 = int_to_ptr.vmem [resolvable:$true] %s170
      %173 = dma.hbm_to_vmem [thread:$0]  %s167, 32, %s171, [#allocation4], 128, 128, 1
      %s174 = sld [smem:[#allocation6 + $0xa]]
      %s175 = sshrl.u32 %s174, 3
      %s176 = sand.u32 %s174, 7
      %s177 = smul.u32 %s175, 16
      %s178 = sadd.s32 %s176, %s177
      %s179 = smul.addr %s178, 16
      %s180 = scalar_lea.hbm %s1, %s179
      %s181 = scalar_lea.vmem [#allocation2], 18
      %s183 = sshll.u32 %s181, 4
      %s184 = int_to_ptr.vmem [resolvable:$true] %s183
      %186 = dma.hbm_to_vmem [thread:$0]  %s180, 32, %s184, [#allocation4], 128, 128, 1
      %s187 = sld [smem:[#allocation6 + $0xb]]
      %s188 = sshrl.u32 %s187, 3
      %s189 = sand.u32 %s187, 7
      %s190 = smul.u32 %s188, 16
      %s191 = sadd.s32 %s189, %s190
      %s192 = smul.addr %s191, 16
      %s193 = scalar_lea.hbm %s1, %s192
      %s194 = scalar_lea.vmem [#allocation2], 19
      %s196 = sshll.u32 %s194, 4
      %s197 = int_to_ptr.vmem [resolvable:$true] %s196
      %199 = dma.hbm_to_vmem [thread:$0]  %s193, 32, %s197, [#allocation4], 128, 128, 1
      %s200 = sld [smem:[#allocation6 + $0xc]]
      %s201 = sshrl.u32 %s200, 3
      %s202 = sand.u32 %s200, 7
      %s203 = smul.u32 %s201, 16
      %s204 = sadd.s32 %s202, %s203
      %s205 = smul.addr %s204, 16
      %s206 = scalar_lea.hbm %s1, %s205
      %s207 = scalar_lea.vmem [#allocation2], 20
      %s209 = sshll.u32 %s207, 4
      %s210 = int_to_ptr.vmem [resolvable:$true] %s209
      %212 = dma.hbm_to_vmem [thread:$0]  %s206, 32, %s210, [#allocation4], 128, 128, 1
      %s213 = sld [smem:[#allocation6 + $0xd]]
      %s214 = sshrl.u32 %s213, 3
      %s215 = sand.u32 %s213, 7
      %s216 = smul.u32 %s214, 16
      %s217 = sadd.s32 %s215, %s216
      %s218 = smul.addr %s217, 16
      %s219 = scalar_lea.hbm %s1, %s218
      %s220 = scalar_lea.vmem [#allocation2], 21
      %s222 = sshll.u32 %s220, 4
      %s223 = int_to_ptr.vmem [resolvable:$true] %s222
      %225 = dma.hbm_to_vmem [thread:$0]  %s219, 32, %s223, [#allocation4], 128, 128, 1
      %s226 = sld [smem:[#allocation6 + $0xe]]
      %s227 = sshrl.u32 %s226, 3
      %s228 = sand.u32 %s226, 7
      %s229 = smul.u32 %s227, 16
      %s230 = sadd.s32 %s228, %s229
      %s231 = smul.addr %s230, 16
      %s232 = scalar_lea.hbm %s1, %s231
      %s233 = scalar_lea.vmem [#allocation2], 22
      %s235 = sshll.u32 %s233, 4
      %s236 = int_to_ptr.vmem [resolvable:$true] %s235
      %238 = dma.hbm_to_vmem [thread:$0]  %s232, 32, %s236, [#allocation4], 128, 128, 1
      %s239 = sld [smem:[#allocation6 + $0xf]]
      %s240 = sshrl.u32 %s239, 3
      %s241 = sand.u32 %s239, 7
      %s242 = smul.u32 %s240, 16
      %s243 = sadd.s32 %s241, %s242
      %s244 = smul.addr %s243, 16
      %s245 = scalar_lea.hbm %s1, %s244
      %s246 = scalar_lea.vmem [#allocation2], 23
      %s248 = sshll.u32 %s246, 4
      %s249 = int_to_ptr.vmem [resolvable:$true] %s248
      %251 = dma.hbm_to_vmem [thread:$0]  %s245, 32, %s249, [#allocation4], 128, 128, 1
    $region13: #{tpu_custom_call.1} parent=1 // pred_fallthru
      _
    %s252 = sadd.s32 0, 1
    %p253 = scmp.lt.s32.totalorder %s252, 1
    // Predicated region
    $region14: #{tpu_custom_call.1} parent=1 // pred_check
      %p254 = pneg %p253
    $region15: #{tpu_custom_call.1} parent=1 // pred_check_branch
      %256 = sbr.rel (%p254) target = $region17
    $region16: #{tpu_custom_call.1} parent=1 // pred_region
      %p257 = scmp.lt.s32.totalorder %s252, 0
      %s258 = ssub.s32 0, %s252
      %s259 = scalar_select %p257, %s258, %s252
      %s260 = sand.u32 %s259, 1
      %s261 = ssub.s32 0, %s260
      %s262 = scalar_select %p257, %s261, %s260
      %p263 = scmp.ne.s32.totalorder %s262, 0
      %p264 = scmp.lt.s32.totalorder %s262, 0
      %p265 = pnand %p264, %p263
      %p266 = pneg %p265
      %s267 = sadd.s32 %s262, 2
      %s268 = scalar_select %p266, %s267, %s262
      %s269 = smul.u32 %s252, 16
      %s270 = sld [smem:[#allocation6 + %s269]]
      %s271 = sshrl.u32 %s270, 3
      %s272 = sand.u32 %s270, 7
      %s273 = smul.u32 %s271, 16
      %s274 = sadd.s32 %s272, %s273
      %s275 = smul.addr %s274, 16
      %s276 = scalar_lea.hbm %s1, %s275
      %s277 = smul.u32 %s268, 32
      %s278 = scalar_lea.vmem [#allocation2], %s277
      %s279 = scalar_lea.sflag [#allocation4], %s268
      %s281 = sshll.u32 %s278, 4
      %s282 = int_to_ptr.vmem [resolvable:$true] %s281
      %284 = dma.hbm_to_vmem [thread:$0]  %s276, 32, %s282, %s279, 128, 128, 1
      %s285 = sadd.s32 %s269, 1
      %s286 = sld [smem:[#allocation6 + %s285]]
      %s287 = sshrl.u32 %s286, 3
      %s288 = sand.u32 %s286, 7
      %s289 = smul.u32 %s287, 16
      %s290 = sadd.s32 %s288, %s289
      %s291 = smul.addr %s290, 16
      %s292 = scalar_lea.hbm %s1, %s291
      %s293 = sadd.s32 1, %s277
      %s294 = scalar_lea.vmem [#allocation2], %s293
      %s296 = sshll.u32 %s294, 4
      %s297 = int_to_ptr.vmem [resolvable:$true] %s296
      %299 = dma.hbm_to_vmem [thread:$0]  %s292, 32, %s297, %s279, 128, 128, 1
      %s300 = sadd.s32 %s269, 2
      %s301 = sld [smem:[#allocation6 + %s300]]
      %s302 = sshrl.u32 %s301, 3
      %s303 = sand.u32 %s301, 7
      %s304 = smul.u32 %s302, 16
      %s305 = sadd.s32 %s303, %s304
      %s306 = smul.addr %s305, 16
      %s307 = scalar_lea.hbm %s1, %s306
      %s308 = sadd.s32 2, %s277
      %s309 = scalar_lea.vmem [#allocation2], %s308
      %s311 = sshll.u32 %s309, 4
      %s312 = int_to_ptr.vmem [resolvable:$true] %s311
      %314 = dma.hbm_to_vmem [thread:$0]  %s307, 32, %s312, %s279, 128, 128, 1
      %s315 = sadd.s32 %s269, 3
      %s316 = sld [smem:[#allocation6 + %s315]]
      %s317 = sshrl.u32 %s316, 3
      %s318 = sand.u32 %s316, 7
      %s319 = smul.u32 %s317, 16
      %s320 = sadd.s32 %s318, %s319
      %s321 = smul.addr %s320, 16
      %s322 = scalar_lea.hbm %s1, %s321
      %s323 = sadd.s32 3, %s277
      %s324 = scalar_lea.vmem [#allocation2], %s323
      %s326 = sshll.u32 %s324, 4
      %s327 = int_to_ptr.vmem [resolvable:$true] %s326
      %329 = dma.hbm_to_vmem [thread:$0]  %s322, 32, %s327, %s279, 128, 128, 1
      %s330 = sadd.s32 %s269, 4
      %s331 = sld [smem:[#allocation6 + %s330]]
      %s332 = sshrl.u32 %s331, 3
      %s333 = sand.u32 %s331, 7
      %s334 = smul.u32 %s332, 16
      %s335 = sadd.s32 %s333, %s334
      %s336 = smul.addr %s335, 16
      %s337 = scalar_lea.hbm %s1, %s336
      %s338 = sadd.s32 4, %s277
      %s339 = scalar_lea.vmem [#allocation2], %s338
      %s341 = sshll.u32 %s339, 4
      %s342 = int_to_ptr.vmem [resolvable:$true] %s341
      %344 = dma.hbm_to_vmem [thread:$0]  %s337, 32, %s342, %s279, 128, 128, 1
      %s345 = sadd.s32 %s269, 5
      %s346 = sld [smem:[#allocation6 + %s345]]
      %s347 = sshrl.u32 %s346, 3
      %s348 = sand.u32 %s346, 7
      %s349 = smul.u32 %s347, 16
      %s350 = sadd.s32 %s348, %s349
      %s351 = smul.addr %s350, 16
      %s352 = scalar_lea.hbm %s1, %s351
      %s353 = sadd.s32 5, %s277
      %s354 = scalar_lea.vmem [#allocation2], %s353
      %s356 = sshll.u32 %s354, 4
      %s357 = int_to_ptr.vmem [resolvable:$true] %s356
      %359 = dma.hbm_to_vmem [thread:$0]  %s352, 32, %s357, %s279, 128, 128, 1
      %s360 = sadd.s32 %s269, 6
      %s361 = sld [smem:[#allocation6 + %s360]]
      %s362 = sshrl.u32 %s361, 3
      %s363 = sand.u32 %s361, 7
      %s364 = smul.u32 %s362, 16
      %s365 = sadd.s32 %s363, %s364
      %s366 = smul.addr %s365, 16
      %s367 = scalar_lea.hbm %s1, %s366
      %s368 = sadd.s32 6, %s277
      %s369 = scalar_lea.vmem [#allocation2], %s368
      %s371 = sshll.u32 %s369, 4
      %s372 = int_to_ptr.vmem [resolvable:$true] %s371
      %374 = dma.hbm_to_vmem [thread:$0]  %s367, 32, %s372, %s279, 128, 128, 1
      %s375 = sadd.s32 %s269, 7
      %s376 = sld [smem:[#allocation6 + %s375]]
      %s377 = sshrl.u32 %s376, 3
      %s378 = sand.u32 %s376, 7
      %s379 = smul.u32 %s377, 16
      %s380 = sadd.s32 %s378, %s379
      %s381 = smul.addr %s380, 16
      %s382 = scalar_lea.hbm %s1, %s381
      %s383 = sadd.s32 7, %s277
      %s384 = scalar_lea.vmem [#allocation2], %s383
      %s386 = sshll.u32 %s384, 4
      %s387 = int_to_ptr.vmem [resolvable:$true] %s386
      %389 = dma.hbm_to_vmem [thread:$0]  %s382, 32, %s387, %s279, 128, 128, 1
      %s390 = sadd.s32 %s269, 8
      %s391 = sld [smem:[#allocation6 + %s390]]
      %s392 = sshrl.u32 %s391, 3
      %s393 = sand.u32 %s391, 7
      %s394 = smul.u32 %s392, 16
      %s395 = sadd.s32 %s393, %s394
      %s396 = smul.addr %s395, 16
      %s397 = scalar_lea.hbm %s1, %s396
      %s398 = sadd.s32 16, %s277
      %s399 = scalar_lea.vmem [#allocation2], %s398
      %s401 = sshll.u32 %s399, 4
      %s402 = int_to_ptr.vmem [resolvable:$true] %s401
      %404 = dma.hbm_to_vmem [thread:$0]  %s397, 32, %s402, %s279, 128, 128, 1
      %s405 = sadd.s32 %s269, 9
      %s406 = sld [smem:[#allocation6 + %s405]]
      %s407 = sshrl.u32 %s406, 3
      %s408 = sand.u32 %s406, 7
      %s409 = smul.u32 %s407, 16
      %s410 = sadd.s32 %s408, %s409
      %s411 = smul.addr %s410, 16
      %s412 = scalar_lea.hbm %s1, %s411
      %s413 = sadd.s32 17, %s277
      %s414 = scalar_lea.vmem [#allocation2], %s413
      %s416 = sshll.u32 %s414, 4
      %s417 = int_to_ptr.vmem [resolvable:$true] %s416
      %419 = dma.hbm_to_vmem [thread:$0]  %s412, 32, %s417, %s279, 128, 128, 1
      %s420 = sadd.s32 %s269, 10
      %s421 = sld [smem:[#allocation6 + %s420]]
      %s422 = sshrl.u32 %s421, 3
      %s423 = sand.u32 %s421, 7
      %s424 = smul.u32 %s422, 16
      %s425 = sadd.s32 %s423, %s424
      %s426 = smul.addr %s425, 16
      %s427 = scalar_lea.hbm %s1, %s426
      %s428 = sadd.s32 18, %s277
      %s429 = scalar_lea.vmem [#allocation2], %s428
      %s431 = sshll.u32 %s429, 4
      %s432 = int_to_ptr.vmem [resolvable:$true] %s431
      %434 = dma.hbm_to_vmem [thread:$0]  %s427, 32, %s432, %s279, 128, 128, 1
      %s435 = sadd.s32 %s269, 11
      %s436 = sld [smem:[#allocation6 + %s435]]
      %s437 = sshrl.u32 %s436, 3
      %s438 = sand.u32 %s436, 7
      %s439 = smul.u32 %s437, 16
      %s440 = sadd.s32 %s438, %s439
      %s441 = smul.addr %s440, 16
      %s442 = scalar_lea.hbm %s1, %s441
      %s443 = sadd.s32 19, %s277
      %s444 = scalar_lea.vmem [#allocation2], %s443
      %s446 = sshll.u32 %s444, 4
      %s447 = int_to_ptr.vmem [resolvable:$true] %s446
      %449 = dma.hbm_to_vmem [thread:$0]  %s442, 32, %s447, %s279, 128, 128, 1
      %s450 = sadd.s32 %s269, 12
      %s451 = sld [smem:[#allocation6 + %s450]]
      %s452 = sshrl.u32 %s451, 3
      %s453 = sand.u32 %s451, 7
      %s454 = smul.u32 %s452, 16
      %s455 = sadd.s32 %s453, %s454
      %s456 = smul.addr %s455, 16
      %s457 = scalar_lea.hbm %s1, %s456
      %s458 = sadd.s32 20, %s277
      %s459 = scalar_lea.vmem [#allocation2], %s458
      %s461 = sshll.u32 %s459, 4
      %s462 = int_to_ptr.vmem [resolvable:$true] %s461
      %464 = dma.hbm_to_vmem [thread:$0]  %s457, 32, %s462, %s279, 128, 128, 1
      %s465 = sadd.s32 %s269, 13
      %s466 = sld [smem:[#allocation6 + %s465]]
      %s467 = sshrl.u32 %s466, 3
      %s468 = sand.u32 %s466, 7
      %s469 = smul.u32 %s467, 16
      %s470 = sadd.s32 %s468, %s469
      %s471 = smul.addr %s470, 16
      %s472 = scalar_lea.hbm %s1, %s471
      %s473 = sadd.s32 21, %s277
      %s474 = scalar_lea.vmem [#allocation2], %s473
      %s476 = sshll.u32 %s474, 4
      %s477 = int_to_ptr.vmem [resolvable:$true] %s476
      %479 = dma.hbm_to_vmem [thread:$0]  %s472, 32, %s477, %s279, 128, 128, 1
      %s480 = sadd.s32 %s269, 14
      %s481 = sld [smem:[#allocation6 + %s480]]
      %s482 = sshrl.u32 %s481, 3
      %s483 = sand.u32 %s481, 7
      %s484 = smul.u32 %s482, 16
      %s485 = sadd.s32 %s483, %s484
      %s486 = smul.addr %s485, 16
      %s487 = scalar_lea.hbm %s1, %s486
      %s488 = sadd.s32 22, %s277
      %s489 = scalar_lea.vmem [#allocation2], %s488
      %s491 = sshll.u32 %s489, 4
      %s492 = int_to_ptr.vmem [resolvable:$true] %s491
      %494 = dma.hbm_to_vmem [thread:$0]  %s487, 32, %s492, %s279, 128, 128, 1
      %s495 = sadd.s32 %s269, 15
      %s496 = sld [smem:[#allocation6 + %s495]]
      %s497 = sshrl.u32 %s496, 3
      %s498 = sand.u32 %s496, 7
      %s499 = smul.u32 %s497, 16
      %s500 = sadd.s32 %s498, %s499
      %s501 = smul.addr %s500, 16
      %s502 = scalar_lea.hbm %s1, %s501
      %s503 = sadd.s32 23, %s277
      %s504 = scalar_lea.vmem [#allocation2], %s503
      %s506 = sshll.u32 %s504, 4
      %s507 = int_to_ptr.vmem [resolvable:$true] %s506
      %509 = dma.hbm_to_vmem [thread:$0]  %s502, 32, %s507, %s279, 128, 128, 1
    $region17: #{tpu_custom_call.1} parent=1 // pred_fallthru
      _
    %s510 = scalar_lea.sflag [#allocation4], %s36
    %s511 = smul.u32 1, 2
    %s512 = sshll.u32 %s511, 4
    %513 = dma.done %s510, %s512
    %s514 = sshll.u32 %s511, 4
    %515 = dma.done %s510, %s514
    %s516 = sshll.u32 %s511, 4
    %517 = dma.done %s510, %s516
    %s518 = sshll.u32 %s511, 4
    %519 = dma.done %s510, %s518
    %s520 = sshll.u32 %s511, 4
    %521 = dma.done %s510, %s520
    %s522 = sshll.u32 %s511, 4
    %523 = dma.done %s510, %s522
    %s524 = sshll.u32 %s511, 4
    %525 = dma.done %s510, %s524
    %s526 = sshll.u32 %s511, 4
    %527 = dma.done %s510, %s526
    %s528 = sshll.u32 %s511, 4
    %529 = dma.done %s510, %s528
    %s530 = sshll.u32 %s511, 4
    %531 = dma.done %s510, %s530
    %s532 = sshll.u32 %s511, 4
    %533 = dma.done %s510, %s532
    %s534 = sshll.u32 %s511, 4
    %535 = dma.done %s510, %s534
    %s536 = sshll.u32 %s511, 4
    %537 = dma.done %s510, %s536
    %s538 = sshll.u32 %s511, 4
    %539 = dma.done %s510, %s538
    %s540 = sshll.u32 %s511, 4
    %541 = dma.done %s510, %s540
    %s542 = sshll.u32 %s511, 4
    %543 = dma.done %s510, %s542
    %s544 = smul.u32 %s36, 4
    %s545 = smul.addr %s544, 8
    %s546 = scalar_lea.vmem [#allocation2], %s545
    %v547 = vld [vmem:[%s546] sm:$0xff]
    %v548 = vld [vmem:[%s546 + $0x8] sm:$0xff]
    %v549 = vld [vmem:[%s546 + $0x10] sm:$0xff]
    %v550 = vld [vmem:[%s546 + $0x18] sm:$0xff]
    %v551 = vld [vmem:[#allocation7] sm:$0xff]
    %v552 = vld [vmem:[#allocation7 + $0x8] sm:$0xff]
    %v553 = vld [vmem:[#allocation7 + $0x10] sm:$0xff]
    %v554 = vld [vmem:[#allocation7 + $0x18] sm:$0xff]
    %v555 = vld [vmem:[#allocation3] sm:$0xff]
    %v556 = vld [vmem:[#allocation3 + $0x8] sm:$0xff]
    %v557 = vld [vmem:[#allocation3 + $0x10] sm:$0xff]
    %v558 = vld [vmem:[#allocation3 + $0x18] sm:$0xff]
    %v559 = vmax.f32 %v547, 0.0
    %v560 = vmax.f32 %v548, 0.0
    %v561 = vmax.f32 %v549, 0.0
    %v562 = vmax.f32 %v550, 0.0
    %v563 = vmul.f32 %v547, %v551
    %v564 = vmul.f32 %v548, %v552
    %v565 = vmul.f32 %v549, %v553
    %v566 = vmul.f32 %v550, %v554
    %v567 = vsub.f32 %v559, %v563
    %v568 = vsub.f32 %v560, %v564
    %v569 = vsub.f32 %v561, %v565
    %v570 = vsub.f32 %v562, %v566
    %v571 = vand.u32 2147483647, %v547
    %v572 = vand.u32 2147483647, %v548
    %v573 = vand.u32 2147483647, %v549
    %v574 = vand.u32 2147483647, %v550
    %v575 = vsub.f32 0.0, %v571
    %v576 = vsub.f32 0.0, %v572
    %v577 = vsub.f32 0.0, %v573
    %v578 = vsub.f32 0.0, %v574
    %v579 = vmul.f32 %v575, 1.442695
    %v580 = vpow.pop %v579
    %v581 = vmul.f32 %v576, 1.442695
    %v582 = vpow.pop %v581
    %v583 = vmul.f32 %v577, 1.442695
    %v584 = vpow.pop %v583
    %v585 = vmul.f32 %v578, 1.442695
    %v586 = vpow.pop %v585
    %v587 = vadd.f32 %v580, 1.0
    %v588 = vlog2.pop %v587
    %v589 = vmul.f32 %v588, 0.6931472
    %v590 = vmul.f32 -0.5, %v580
    %v591 = vadd.f32 %v590, 1.0
    %v592 = vmul.f32 %v591, %v580
    %v593 = vand.u32 2147483647, %v580
    %vm594 = vcmp.lt.f32.partialorder %v593, 0.0004427343
    %v595 = vsel %vm594, %v592, %v589
    %v596 = vadd.f32 %v582, 1.0
    %v597 = vlog2.pop %v596
    %v598 = vmul.f32 %v597, 0.6931472
    %v599 = vmul.f32 -0.5, %v582
    %v600 = vadd.f32 %v599, 1.0
    %v601 = vmul.f32 %v600, %v582
    %v602 = vand.u32 2147483647, %v582
    %vm603 = vcmp.lt.f32.partialorder %v602, 0.0004427343
    %v604 = vsel %vm603, %v601, %v598
    %v605 = vadd.f32 %v584, 1.0
    %v606 = vlog2.pop %v605
    %v607 = vmul.f32 %v606, 0.6931472
    %v608 = vmul.f32 -0.5, %v584
    %v609 = vadd.f32 %v608, 1.0
    %v610 = vmul.f32 %v609, %v584
    %v611 = vand.u32 2147483647, %v584
    %vm612 = vcmp.lt.f32.partialorder %v611, 0.0004427343
    %v613 = vsel %vm612, %v610, %v607
    %v614 = vadd.f32 %v586, 1.0
    %v615 = vlog2.pop %v614
    %v616 = vmul.f32 %v615, 0.6931472
    %v617 = vmul.f32 -0.5, %v586
    %v618 = vadd.f32 %v617, 1.0
    %v619 = vmul.f32 %v618, %v586
    %v620 = vand.u32 2147483647, %v586
    %vm621 = vcmp.lt.f32.partialorder %v620, 0.0004427343
    %v622 = vsel %vm621, %v619, %v616
    %v623 = vadd.f32 %v567, %v595
    %v624 = vadd.f32 %v568, %v604
    %v625 = vadd.f32 %v569, %v613
    %v626 = vadd.f32 %v570, %v622
    %s627 = smul.u32 0, 16
    %v628 = vlaneseq
    %v629 = vshrl.u32 %v628, 7
    %v630 = vadd.s32 %v629, 8
    %v631 = vstv %s627
    %v632 = vadd.s32 %v631, %v629
    %v633 = vadd.s32 %v631, %v630
    %vm634 = vcmp.lt.s32.totalorder %v632, 4
    %vm635 = vcmp.lt.s32.totalorder %v633, 4
    %v636 = vsel %vm634, %v623, 0.0
    %v637 = vsel %vm634, %v624, 0.0
    %v638 = vsel %vm635, %v625, 0.0
    %v639 = vsel %vm635, %v626, 0.0
    %v640 = vadd.f32 %v555, %v636
    %v641 = vadd.f32 %v556, %v637
    %v642 = vadd.f32 %v557, %v638
    %v643 = vadd.f32 %v558, %v639
    %644 = vst [vmem:[#allocation3] sm:$0xff] %v640
    %645 = vst [vmem:[#allocation3 + $0x8] sm:$0xff] %v641
    %646 = vst [vmem:[#allocation3 + $0x10] sm:$0xff] %v642
    %647 = vst [vmem:[#allocation3 + $0x18] sm:$0xff] %v643
    // Predicated region
    $region18: #{tpu_custom_call.1} parent=1 // pred_check
      %p648 = pneg %p37
    $region19: #{tpu_custom_call.1} parent=1 // pred_check_branch
      %650 = sbr.rel (%p648) target = $region21
    $region20: #{tpu_custom_call.1} parent=1 // pred_region
      %v651 = vld [vmem:[#allocation3] sm:$0xff]
      %v652 = vld [vmem:[#allocation3 + $0x8] sm:$0xff]
      %v653 = vld [vmem:[#allocation3 + $0x10] sm:$0xff]
      %v654 = vld [vmem:[#allocation3 + $0x18] sm:$0xff]
      %v655 = vadd.f32 %v651, %v652
      %v656 = vadd.f32 %v655, %v653
      %v657 = vadd.f32 %v656, %v654
      %658 = vadd.xlane.f32.xlu0 %v657
      %v659 = vpop.xlane.xlu0 %658
      %v660 = vrot.slane %v659, 4
      %v661 = vadd.f32 %v659, %v660
      %v662 = vrot.slane %v661, 2
      %v663 = vadd.f32 %v661, %v662
      %v664 = vrot.slane %v663, 1
      %v665 = vadd.f32 %v663, %v664
      %s666 = vtos %v665
      %v667 = vstv %s666
      %v668 = vmul.f32 %v667, 0.0009765625
      %vm669 = vcmask 0
      %670 = vst.msk [vmem:[#allocation10] sm:$0x1] %vm669, %v668
    $region21: #{tpu_custom_call.1} parent=1 // pred_fallthru
      _
    // Predicated region
    $region22: #{tpu_custom_call.1} parent=1 // pred_check
      _
    $region23: #{tpu_custom_call.1} parent=1 // pred_check_branch
      %672 = sbr.rel (0) target = $region25
    $region24: #{tpu_custom_call.1} parent=1 // pred_region
      %s674 = ssub.s32 16, 16
      %675 = vsyncadd [#allocation9], %s674
      %s677 = sshll.u32 [#allocation10], 4
      %s678 = int_to_ptr.vmem [resolvable:$true] %s677
      %680 = dma.vmem_to_hbm [thread:$0]  %s678, 16, %s3, [#allocation9]
    $region25: #{tpu_custom_call.1} parent=1 // pred_fallthru
      _
    // Predicated region
    $region26: #{tpu_custom_call.1} parent=1 // pred_check
      _
    $region27: #{tpu_custom_call.1} parent=1 // pred_check_branch
      %682 = sbr.rel (0) target = $region29
    $region28: #{tpu_custom_call.1} parent=1 // pred_region
      %683 = dma.done [#allocation9], 16
    $region29: #{tpu_custom_call.1} parent=1 // pred_fallthru
      _
    %684 = vsyncpa [#allocation8], 1
    %685 = vsyncpa [#allocation9], 1
  %686 = vsyncmov [#allocation4]
  %s687 = vpop.sfrf %686
  %p688 = scmp.eq.s32.totalorder %s687, 0
  %p689 = pneg %p688
  %691 = shalt.err (%p689)
  %s692 = scalar_lea.sflag [#allocation4], 1
  %693 = vsyncmov %s692
  %s694 = vpop.sfrf %693
  %p695 = scmp.eq.s32.totalorder %s694, 0
  %p696 = pneg %p695
  %698 = shalt.err (%p696)

</llo_original>
